<compile_context>
chip_gen: v6e
topology: v6e:2x2x1
jax: 0.10.0
libtpu: 0.0.40
codegen_flags: <defaults>
</compile_context>

<pallas_src>
import numpy as np
import jax
import jax.numpy as jnp
from jax.experimental import pallas as pl
from jax.experimental.pallas import tpu as pltpu  # noqa: F401  (TPU backend)

# ----------------------------- shapes ---------------------------------------
N, C, H, W = 1, 4, 48, 48
KH, KW = 8, 8
SH, SW = 10, 10
OH = (H - KH) // SH + 1          # 5
OW = (W - KW) // SW + 1          # 5
IN_FEATURES = C * OH * OW        # 100
OUT_FEATURES = 3 * 32 * 32       # 3072
ROWS = C * OH                    # 20  (pooled rows: channel*OH)


# ----------------------------- fused kernel ---------------------------------
def fused_forward_kernel(x_ref, ph_ref, pw_ref, sel_ref, mask_ref,
                         w_ref, b_ref, o_ref):
    # Everything is VMEM-resident for the single grid step.
    x = x_ref[...]                                                      # (192, 48) f32

    # Separable AvgPool2d: pool along H, then along W (two tiny MXU matmuls).
    xh = jnp.dot(ph_ref[...], x, preferred_element_type=jnp.float32)        # (20, 48)
    pooled = jnp.dot(xh, pw_ref[...], preferred_element_type=jnp.float32)   # (20, 5)

    # Flatten (20,5) -> (1,100) WITHOUT an in-kernel reshape:
    #   spread[i, j] = pooled[i, j % 5]    (matmul w/ constant 0/1 spread matrix)
    #   flat[0, j]   = spread[j // 5, j]   (constant row mask + sublane reduce)
    spread = jnp.dot(pooled, sel_ref[...],
                     preferred_element_type=jnp.float32)                    # (20, 100)
    flat = jnp.sum(spread * mask_ref[...], axis=0, keepdims=True)           # (1, 100)

    # Linear + folded epilogue: W'' / b'' already carry the *0.5, *0.7071068
    # and mean(-1) terms, so ONE bf16 dot yields v8 directly.
    out = jnp.dot(flat.astype(jnp.bfloat16), w_ref[...],
                  preferred_element_type=jnp.float32)                       # (1, 3072)
    o_ref[...] = out + b_ref[...]


# ----------------------------- wrapper --------------------------------------
def model_forward(x1, pool_h, pool_w, sel, mask, w_pp, b_pp):
    x2d = x1.reshape(C * H, W)                       # free row-major view (batch == 1)
    v8 = pl.pallas_call(
        fused_forward_kernel,
        out_shape=jax.ShapeDtypeStruct((1, OUT_FEATURES), jnp.float32),
        grid=(1,),
        in_specs=[
            pl.BlockSpec((C * H, W), lambda i: (0, 0)),                   # x
            pl.BlockSpec((ROWS, C * H), lambda i: (0, 0)),                # pool_h
            pl.BlockSpec((W, OW), lambda i: (0, 0)),                      # pool_w
            pl.BlockSpec((OW, IN_FEATURES), lambda i: (0, 0)),            # sel (spread)
            pl.BlockSpec((ROWS, IN_FEATURES), lambda i: (0, 0)),          # row mask
            pl.BlockSpec((IN_FEATURES, OUT_FEATURES), lambda i: (0, 0)),  # W'' (bf16)
            pl.BlockSpec((1, OUT_FEATURES), lambda i: (0, 0)),            # b'' (f32)
        ],
        out_specs=pl.BlockSpec((1, OUT_FEATURES), lambda i: (0, 0)),
    )(x2d, pool_h, pool_w, sel, mask, w_pp, b_pp)
    return v8.reshape(-1, 3, 32, 32)


model_forward = jax.jit(model_forward)


# ----------------------------- reference ------------------------------------
def reference_forward(x1, w, b):
    v1 = jax.lax.reduce_window(
        x1, 0.0, jax.lax.add,
        window_dimensions=(1, 1, KH, KW),
        window_strides=(1, 1, SH, SW),
        padding="VALID") / float(KH * KW)
    v2 = v1.reshape(-1, IN_FEATURES)
    v3 = v2 @ w + b[0]
    v4 = v3 * 0.5
    v5 = v3 * 0.7071068
    v7 = v5.mean(-1)
    v8 = v4 + v7
    return v8.reshape(-1, 3, 32, 32)


# ----------------------------- constant matrices -----------------------------
def build_pool_h():
    # (C*OH, C*H): 1/KH at (c*OH+oh, c*H + oh*SH + kh)   -- pools along H
    p = np.zeros((ROWS, C * H), dtype=np.float32)
    for c in range(C):
        for oh in range(OH):
            for kh in range(KH):
                p[c * OH + oh, c * H + oh * SH + kh] = 1.0 / KH
    return jnp.asarray(p)


def build_pool_w():
    # (W, OW): 1/KW at (ow*SW + kw, ow)                  -- pools along W
    p = np.zeros((W, OW), dtype=np.float32)
    for ow in range(OW):
        for kw in range(KW):
            p[ow * SW + kw, ow] = 1.0 / KW
    return jnp.asarray(p)


def build_sel():
    # (OW, IN_FEATURES): sel[ow, j] = 1 iff j % OW == ow   (lane spread)
    s = np.zeros((OW, IN_FEATURES), dtype=np.float32)
    for j in range(IN_FEATURES):
        s[j % OW, j] = 1.0
    return jnp.asarray(s)


def build_row_mask():
    # (ROWS, IN_FEATURES): mask[i, j] = 1 iff j // OW == i (row selection)
    m = np.zeros((ROWS, IN_FEATURES), dtype=np.float32)
    for j in range(IN_FEATURES):
        m[j // OW, j] = 1.0
    return jnp.asarray(m)


# ----------------------------- main ------------------------------------------
if __name__ == "__main__":
    key = jax.random.PRNGKey(0)
    kx, kw, kb = jax.random.split(key, 3)

    x1 = jax.random.normal(kx, (N, C, H, W), dtype=jnp.float32)

    # PyTorch-style Linear init: uniform(-1/sqrt(in), 1/sqrt(in))
    bound = 1.0 / float(np.sqrt(IN_FEATURES))
    w = jax.random.uniform(kw, (IN_FEATURES, OUT_FEATURES),
                           dtype=jnp.float32, minval=-bound, maxval=bound)
    b = jax.random.uniform(kb, (1, OUT_FEATURES),
                           dtype=jnp.float32, minval=-bound, maxval=bound)

    # One-time host-side preprocessing (static weights, not a per-call op):
    # fold the *0.5 / *0.7071068 / mean(-1) / add epilogue into W'' and b'',
    # and stream W'' as bfloat16 (f32 accumulation in the kernel).
    mean_scale = 0.7071068 / OUT_FEATURES
    w_pp = (0.5 * w + mean_scale * jnp.sum(w, axis=1, keepdims=True)
            ).astype(jnp.bfloat16)
    b_pp = (0.5 * b + mean_scale * jnp.sum(b)).astype(jnp.float32)

    pool_h = build_pool_h()
    pool_w = build_pool_w()
    sel = build_sel()
    mask = build_row_mask()

    out = model_forward(x1, pool_h, pool_w, sel, mask, w_pp, b_pp)
    out = jax.block_until_ready(out)

    ref = jax.block_until_ready(reference_forward(x1, w, b))

    assert out.shape == (1, 3, 32, 32), out.shape
    assert jnp.allclose(out, ref, rtol=1e-3, atol=1e-3), (
        float(jnp.max(jnp.abs(out - ref))))

    print("KERNEL_OK")
</pallas_src>

<mosaic_0001>
module attributes {stable_mosaic.version = 11 : i64} {
  func.func @fused_forward_kernel(%arg0: i32, %arg1: memref<192x48xf32, #tpu.memory_space<vmem>>, %arg2: memref<20x192xf32, #tpu.memory_space<vmem>>, %arg3: memref<48x5xf32, #tpu.memory_space<vmem>>, %arg4: memref<5x100xf32, #tpu.memory_space<vmem>>, %arg5: memref<20x100xf32, #tpu.memory_space<vmem>>, %arg6: memref<100x3072xbf16, #tpu.memory_space<vmem>>, %arg7: memref<1x3072xf32, #tpu.memory_space<vmem>>, %arg8: memref<1x3072xf32, #tpu.memory_space<vmem>>) attributes {dimension_semantics = [#tpu.dimension_semantics<arbitrary>], iteration_bounds = array<i64: 1>, scalar_prefetch = 0 : i64, scratch_operands = 0 : i64, tpu.core_type = #tpu.core_type<tc>, window_params = [{pipeline_mode = #tpu.pipeline_mode<synchronous>, transform_indices = @transform_0, window_bounds = array<i64: 192, 48>}, {pipeline_mode = #tpu.pipeline_mode<synchronous>, transform_indices = @transform_1, window_bounds = array<i64: 20, 192>}, {pipeline_mode = #tpu.pipeline_mode<synchronous>, transform_indices = @transform_2, window_bounds = array<i64: 48, 5>}, {pipeline_mode = #tpu.pipeline_mode<synchronous>, transform_indices = @transform_3, window_bounds = array<i64: 5, 100>}, {pipeline_mode = #tpu.pipeline_mode<synchronous>, transform_indices = @transform_4, window_bounds = array<i64: 20, 100>}, {pipeline_mode = #tpu.pipeline_mode<synchronous>, transform_indices = @transform_5, window_bounds = array<i64: 100, 3072>}, {pipeline_mode = #tpu.pipeline_mode<synchronous>, transform_indices = @transform_6, window_bounds = array<i64: 1, 3072>}, {pipeline_mode = #tpu.pipeline_mode<synchronous>, transform_indices = @transform_7, window_bounds = array<i64: 1, 3072>}]} {
    %c0 = arith.constant 0 : index
    %c0_0 = arith.constant 0 : index
    %0 = vector.load %arg1[%c0, %c0_0] : memref<192x48xf32, #tpu.memory_space<vmem>>, vector<192x48xf32>
    %c0_1 = arith.constant 0 : index
    %c0_2 = arith.constant 0 : index
    %1 = vector.load %arg2[%c0_1, %c0_2] : memref<20x192xf32, #tpu.memory_space<vmem>>, vector<20x192xf32>
    %cst = arith.constant dense<0.000000e+00> : vector<20x48xf32>
    %2 = tpu.matmul %1, %0, %cst {dimension_numbers = #tpu.dot_dimension_numbers<[1], [0], [0], [1], [0, 0, 1, 1], [], []>} : vector<20x192xf32>, vector<192x48xf32>, vector<20x48xf32> -> vector<20x48xf32>
    %c0_3 = arith.constant 0 : index
    %c0_4 = arith.constant 0 : index
    %3 = vector.load %arg3[%c0_3, %c0_4] : memref<48x5xf32, #tpu.memory_space<vmem>>, vector<48x5xf32>
    %cst_5 = arith.constant dense<0.000000e+00> : vector<20x5xf32>
    %4 = tpu.matmul %2, %3, %cst_5 {dimension_numbers = #tpu.dot_dimension_numbers<[1], [0], [0], [1], [0, 0, 1, 1], [], []>} : vector<20x48xf32>, vector<48x5xf32>, vector<20x5xf32> -> vector<20x5xf32>
    %c0_6 = arith.constant 0 : index
    %c0_7 = arith.constant 0 : index
    %5 = vector.load %arg4[%c0_6, %c0_7] : memref<5x100xf32, #tpu.memory_space<vmem>>, vector<5x100xf32>
    %cst_8 = arith.constant dense<0.000000e+00> : vector<20x100xf32>
    %6 = tpu.matmul %4, %5, %cst_8 {dimension_numbers = #tpu.dot_dimension_numbers<[1], [0], [0], [1], [0, 0, 1, 1], [], []>} : vector<20x5xf32>, vector<5x100xf32>, vector<20x100xf32> -> vector<20x100xf32>
    %c0_9 = arith.constant 0 : index
    %c0_10 = arith.constant 0 : index
    %7 = vector.load %arg5[%c0_9, %c0_10] : memref<20x100xf32, #tpu.memory_space<vmem>>, vector<20x100xf32>
    %8 = arith.mulf %6, %7 : vector<20x100xf32>
    %cst_11 = arith.constant dense<0.000000e+00> : vector<100xf32>
    %9 = vector.multi_reduction <add>, %8, %cst_11 [0] : vector<20x100xf32> to vector<100xf32>
    %10 = vector.shape_cast %9 : vector<100xf32> to vector<1x100xf32>
    %11 = arith.truncf %10 : vector<1x100xf32> to vector<1x100xbf16>
    %c0_12 = arith.constant 0 : index
    %c0_13 = arith.constant 0 : index
    %12 = vector.load %arg6[%c0_12, %c0_13] : memref<100x3072xbf16, #tpu.memory_space<vmem>>, vector<100x3072xbf16>
    %cst_14 = arith.constant dense<0.000000e+00> : vector<1x3072xf32>
    %13 = tpu.matmul %11, %12, %cst_14 {dimension_numbers = #tpu.dot_dimension_numbers<[1], [0], [0], [1], [0, 0, 1, 1], [], []>} : vector<1x100xbf16>, vector<100x3072xbf16>, vector<1x3072xf32> -> vector<1x3072xf32>
    %c0_15 = arith.constant 0 : index
    %c0_16 = arith.constant 0 : index
    %14 = vector.load %arg7[%c0_15, %c0_16] : memref<1x3072xf32, #tpu.memory_space<vmem>>, vector<1x3072xf32>
    %15 = arith.addf %13, %14 : vector<1x3072xf32>
    %c0_17 = arith.constant 0 : index
    %c0_18 = arith.constant 0 : index
    %16 = vector.load %arg8[%c0_17, %c0_18] : memref<1x3072xf32, #tpu.memory_space<vmem>>, vector<1x3072xf32>
    tpu.vector_store %arg8[%c0_17, %c0_18], %15 {strides = array<i32>} : memref<1x3072xf32, #tpu.memory_space<vmem>>, vector<1x3072xf32>,
    return
  }
  func.func @transform_0(%arg0: i32) -> (i32, i32) {
    %c0_i32 = arith.constant 0 : i32
    %c0_i32_0 = arith.constant 0 : i32
    %c0_i32_1 = arith.constant 0 : i32
    return %c0_i32, %c0_i32_0 : i32, i32
  }
  func.func @transform_1(%arg0: i32) -> (i32, i32) {
    %c0_i32 = arith.constant 0 : i32
    %c0_i32_0 = arith.constant 0 : i32
    %c0_i32_1 = arith.constant 0 : i32
    return %c0_i32, %c0_i32_0 : i32, i32
  }
  func.func @transform_2(%arg0: i32) -> (i32, i32) {
    %c0_i32 = arith.constant 0 : i32
    %c0_i32_0 = arith.constant 0 : i32
    %c0_i32_1 = arith.constant 0 : i32
    return %c0_i32, %c0_i32_0 : i32, i32
  }
  func.func @transform_3(%arg0: i32) -> (i32, i32) {
    %c0_i32 = arith.constant 0 : i32
    %c0_i32_0 = arith.constant 0 : i32
    %c0_i32_1 = arith.constant 0 : i32
    return %c0_i32, %c0_i32_0 : i32, i32
  }
  func.func @transform_4(%arg0: i32) -> (i32, i32) {
    %c0_i32 = arith.constant 0 : i32
    %c0_i32_0 = arith.constant 0 : i32
    %c0_i32_1 = arith.constant 0 : i32
    return %c0_i32, %c0_i32_0 : i32, i32
  }
  func.func @transform_5(%arg0: i32) -> (i32, i32) {
    %c0_i32 = arith.constant 0 : i32
    %c0_i32_0 = arith.constant 0 : i32
    %c0_i32_1 = arith.constant 0 : i32
    return %c0_i32, %c0_i32_0 : i32, i32
  }
  func.func @transform_6(%arg0: i32) -> (i32, i32) {
    %c0_i32 = arith.constant 0 : i32
    %c0_i32_0 = arith.constant 0 : i32
    %c0_i32_1 = arith.constant 0 : i32
    return %c0_i32, %c0_i32_0 : i32, i32
  }
  func.func @transform_7(%arg0: i32) -> (i32, i32) {
    %c0_i32 = arith.constant 0 : i32
    %c0_i32_0 = arith.constant 0 : i32
    %c0_i32_1 = arith.constant 0 : i32
    return %c0_i32, %c0_i32_0 : i32, i32
  }
}

</mosaic_0001>

<llo_original>
// kernel: model_forward.1
$region0: #{model_forward.1}
  #allocation0 [shape = 'u32[]', space=smem, size = 0x4, offset = 0x4, fixed_abs, tag = 'smem constant byte address 0x4 - core index']
  #allocation1 [shape = 'u32[144,128]{1,0:T(1,128)}', space=vmem, size = 0x12000, scoped, tag = 'internal scratch']
  %s0 = inlined_call_operand.hbm [shape: f32[192,48], index: 0, kind: input, shape index: {}]
  %s1 = inlined_call_operand.vmem [shape: f32[20,192], index: 1, kind: input, shape index: {}]
  %s2 = inlined_call_operand.vmem [shape: f32[48,5], index: 2, kind: input, shape index: {}]
  %s3 = inlined_call_operand.vmem [shape: f32[5,100], index: 3, kind: input, shape index: {}]
  %s4 = inlined_call_operand.hbm [shape: f32[20,100], index: 4, kind: input, shape index: {}]
  %s5 = inlined_call_operand.hbm [shape: bf16[100,3072], index: 5, kind: input, shape index: {}]
  %s6 = inlined_call_operand.hbm [shape: f32[1,3072], index: 6, kind: input, shape index: {}]
  %s7 = inlined_call_operand.vmem [shape: f32[1,3072], index: 7, kind: output, shape index: {}]
  %s8 = sld [smem:[#allocation0]]
  $region54: #{model_forward.1} parent=0
    _
  %s10 = ssub.s32 1, %s8
  %s11 = scalar_select 0, %s10, %s8
  $region1: #{model_forward.1} parent=0
    #allocation2 [shape = 'u8[98304]{0}', space=vmem, size = 0x18000, scoped, tag = 'input window, operand 0, single buffered']
    #allocation3 [shape = 's32[1]{0}', space=sflag, size = 0x4, scoped, tag = 'scoped memory for model_forward.1']
    #allocation4 [shape = 'u8[12288]{0}', space=vmem, size = 0x3000, scoped, tag = 'input window, operand 4, single buffered']
    #allocation5 [shape = 's32[1]{0}', space=sflag, size = 0x4, scoped, tag = 'scoped memory for model_forward.1']
    #allocation6 [shape = 'u8[638976]{0}', space=vmem, size = 0x9c000, scoped, tag = 'input window, operand 5, single buffered']
    #allocation7 [shape = 'u8[12288]{0}', space=vmem, size = 0x3000, scoped, tag = 'input window, operand 6, single buffered']
    #allocation8 [shape = 's32[1]{0}', space=sflag, size = 0x4, scoped, tag = 'scoped memory for model_forward.1']
    %12 = vsyncpa [#allocation3], 0
    %13 = vsyncpa [#allocation5], 0
    %14 = vsyncpa [#allocation8], 0
    // Predicated region
    $region2: #{model_forward.1} parent=1 // pred_check
      _
    $region3: #{model_forward.1} parent=1 // pred_check_branch
      %16 = sbr.rel (0) target = $region5
    $region4: #{model_forward.1} parent=1 // pred_region
      %s18 = ssub.s32 3072, 3072
      %19 = vsyncadd [#allocation3], %s18
      %s20 = sshll.u32 [#allocation2], 4
      %s21 = int_to_ptr.vmem [resolvable:$true] %s20
      %26 = dma.hbm_to_vmem [thread:$0]  %s0, 3072, %s21, [#allocation3], 128, 128, 8
    $region5: #{model_forward.1} parent=1 // pred_fallthru
      _
    // Predicated region
    $region6: #{model_forward.1} parent=1 // pred_check
      _
    $region7: #{model_forward.1} parent=1 // pred_check_branch
      %28 = sbr.rel (0) target = $region9
    $region8: #{model_forward.1} parent=1 // pred_region
      _
    $region9: #{model_forward.1} parent=1 // pred_fallthru
      _
    // Predicated region
    $region10: #{model_forward.1} parent=1 // pred_check
      _
    $region11: #{model_forward.1} parent=1 // pred_check_branch
      %30 = sbr.rel (0) target = $region13
    $region12: #{model_forward.1} parent=1 // pred_region
      _
    $region13: #{model_forward.1} parent=1 // pred_fallthru
      _
    // Predicated region
    $region14: #{model_forward.1} parent=1 // pred_check
      _
    $region15: #{model_forward.1} parent=1 // pred_check_branch
      %32 = sbr.rel (0) target = $region17
    $region16: #{model_forward.1} parent=1 // pred_region
      _
    $region17: #{model_forward.1} parent=1 // pred_fallthru
      _
    // Predicated region
    $region18: #{model_forward.1} parent=1 // pred_check
      _
    $region19: #{model_forward.1} parent=1 // pred_check_branch
      %34 = sbr.rel (0) target = $region21
    $region20: #{model_forward.1} parent=1 // pred_region
      %s36 = ssub.s32 384, 384
      %37 = vsyncadd [#allocation5], %s36
      %s38 = sshll.u32 [#allocation4], 4
      %s39 = int_to_ptr.vmem [resolvable:$true] %s38
      %44 = dma.hbm_to_vmem [thread:$0]  %s4, 384, %s39, [#allocation5], 128, 128, 8
    $region21: #{model_forward.1} parent=1 // pred_fallthru
      _
    // Predicated region
    $region22: #{model_forward.1} parent=1 // pred_check
      _
    $region23: #{model_forward.1} parent=1 // pred_check_branch
      %46 = sbr.rel (0) target = $region25
    $region24: #{model_forward.1} parent=1 // pred_region
      %s48 = ssub.s32 19968, 19968
      %49 = vsyncadd [#allocation5], %s48
      %s50 = sshll.u32 [#allocation6], 4
      %s51 = int_to_ptr.vmem [resolvable:$true] %s50
      %56 = dma.hbm_to_vmem [thread:$0]  %s5, 19968, %s51, [#allocation5], 1536, 1536, 96
    $region25: #{model_forward.1} parent=1 // pred_fallthru
      _
    // Predicated region
    $region26: #{model_forward.1} parent=1 // pred_check
      _
    $region27: #{model_forward.1} parent=1 // pred_check_branch
      %58 = sbr.rel (0) target = $region29
    $region28: #{model_forward.1} parent=1 // pred_region
      %s60 = ssub.s32 384, 384
      %61 = vsyncadd [#allocation8], %s60
      %s63 = sshll.u32 [#allocation7], 4
      %s64 = int_to_ptr.vmem [resolvable:$true] %s63
      %66 = dma.hbm_to_vmem [thread:$0]  %s6, 384, %s64, [#allocation8]
    $region29: #{model_forward.1} parent=1 // pred_fallthru
      _
    // Predicated region
    $region30: #{model_forward.1} parent=1 // pred_check
      _
    $region31: #{model_forward.1} parent=1 // pred_check_branch
      %68 = sbr.rel (0) target = $region33
    $region32: #{model_forward.1} parent=1 // pred_region
      %69 = dma.done [#allocation3], 3072
    $region33: #{model_forward.1} parent=1 // pred_fallthru
      _
    // Predicated region
    $region34: #{model_forward.1} parent=1 // pred_check
      _
    $region35: #{model_forward.1} parent=1 // pred_check_branch
      %71 = sbr.rel (0) target = $region37
    $region36: #{model_forward.1} parent=1 // pred_region
      %72 = dma.done [#allocation5], 384
    $region37: #{model_forward.1} parent=1 // pred_fallthru
      _
    // Predicated region
    $region38: #{model_forward.1} parent=1 // pred_check
      _
    $region39: #{model_forward.1} parent=1 // pred_check_branch
      %74 = sbr.rel (0) target = $region41
    $region40: #{model_forward.1} parent=1 // pred_region
      %75 = dma.done [#allocation5], 19968
    $region41: #{model_forward.1} parent=1 // pred_fallthru
      _
    // Predicated region
    $region42: #{model_forward.1} parent=1 // pred_check
      _
    $region43: #{model_forward.1} parent=1 // pred_check_branch
      %77 = sbr.rel (0) target = $region45
    $region44: #{model_forward.1} parent=1 // pred_region
      %78 = dma.done [#allocation8], 384
    $region45: #{model_forward.1} parent=1 // pred_fallthru
      _
    %v80 = vld [vmem:[#allocation2] sm:$0xff]
    %v81 = vld [vmem:[#allocation2 + $0x8] sm:$0xff]
    %v82 = vld [vmem:[#allocation2 + $0x10] sm:$0xff]
    %v83 = vld [vmem:[#allocation2 + $0x18] sm:$0xff]
    %v84 = vld [vmem:[#allocation2 + $0x20] sm:$0xff]
    %v85 = vld [vmem:[#allocation2 + $0x28] sm:$0xff]
    %v86 = vld [vmem:[#allocation2 + $0x30] sm:$0xff]
    %v87 = vld [vmem:[#allocation2 + $0x38] sm:$0xff]
    %v88 = vld [vmem:[#allocation2 + $0x40] sm:$0xff]
    %v89 = vld [vmem:[#allocation2 + $0x48] sm:$0xff]
    %v90 = vld [vmem:[#allocation2 + $0x50] sm:$0xff]
    %v91 = vld [vmem:[#allocation2 + $0x58] sm:$0xff]
    %v92 = vld [vmem:[#allocation2 + $0x60] sm:$0xff]
    %v93 = vld [vmem:[#allocation2 + $0x68] sm:$0xff]
    %v94 = vld [vmem:[#allocation2 + $0x70] sm:$0xff]
    %v95 = vld [vmem:[#allocation2 + $0x78] sm:$0xff]
    %v96 = vld [vmem:[#allocation2 + $0x80] sm:$0xff]
    %v97 = vld [vmem:[#allocation2 + $0x88] sm:$0xff]
    %v98 = vld [vmem:[#allocation2 + $0x90] sm:$0xff]
    %v99 = vld [vmem:[#allocation2 + $0x98] sm:$0xff]
    %v100 = vld [vmem:[#allocation2 + $0xa0] sm:$0xff]
    %v101 = vld [vmem:[#allocation2 + $0xa8] sm:$0xff]
    %v102 = vld [vmem:[#allocation2 + $0xb0] sm:$0xff]
    %v103 = vld [vmem:[#allocation2 + $0xb8] sm:$0xff]
    %v104 = vld [vmem:[%s1] sm:$0xff]
    %v105 = vld [vmem:[%s1 + $0x8] sm:$0xff]
    %v106 = vld [vmem:[%s1 + $0x10] sm:$0xff]
    %v107 = vld [vmem:[%s1 + $0x18] sm:$0xff]
    %v108 = vld [vmem:[%s1 + $0x20] sm:$0xf]
    %v109 = vld [vmem:[%s1 + $0x28] sm:$0xf]
    %vm110 = vcmask 523264
    %v112 = vsel %vm110, %v105, 0
    %v115 = vsel %vm110, %v107, 0
    %v118 = vsel %vm110, %v109, 0
    %120 = vmatprep.subr.mxu0 0.0
    %121 = vmatpush1.msra.mxu0 %v95
    %122 = vmatprep.subr.mxu0 0.0
    %123 = vmatpush1.msra.mxu0 %v94
    %124 = vmatprep.subr.mxu0 0.0
    %125 = vmatpush1.msra.mxu0 %v93
    %126 = vmatprep.subr.mxu0 0.0
    %127 = vmatpush1.msra.mxu0 %v92
    %128 = vmatprep.subr.mxu0 0.0
    %129 = vmatpush1.msra.mxu0 %v91
    %130 = vmatprep.subr.mxu0 0.0
    %131 = vmatpush1.msra.mxu0 %v90
    %132 = vmatprep.subr.mxu0 0.0
    %133 = vmatpush1.msra.mxu0 %v89
    %134 = vmatprep.subr.mxu0 0.0
    %135 = vmatpush1.msra.mxu0 %v88
    %136 = vmatprep.subr.mxu0 0.0
    %137 = vmatpush1.msra.mxu0 %v87
    %138 = vmatprep.subr.mxu0 0.0
    %139 = vmatpush1.msra.mxu0 %v86
    %140 = vmatprep.subr.mxu0 0.0
    %141 = vmatpush1.msra.mxu0 %v85
    %142 = vmatprep.subr.mxu0 0.0
    %143 = vmatpush1.msra.mxu0 %v84
    %144 = vmatprep.subr.mxu0 0.0
    %145 = vmatpush1.msra.mxu0 %v83
    %146 = vmatprep.subr.mxu0 0.0
    %147 = vmatpush1.msra.mxu0 %v82
    %148 = vmatprep.subr.mxu0 0.0
    %149 = vmatpush1.msra.mxu0 %v81
    %150 = vmatprep.subr.mxu0 0.0
    %151 = vmatpush1.msra.mxu0 %v80
    %152 = vmatprep.subr.mxu0 0.0
    %153 = vmatpush2.msra.mxu0 0.0
    %154 = vmatprep.subr.mxu0 0.0
    %155 = vmatpush2.msra.mxu0 0.0
    %156 = vmatprep.subr.mxu0 0.0
    %157 = vmatpush2.msra.mxu0 0.0
    %158 = vmatprep.subr.mxu0 0.0
    %159 = vmatpush2.msra.mxu0 0.0
    %160 = vmatprep.subr.mxu0 0.0
    %161 = vmatpush2.msra.mxu0 0.0
    %162 = vmatprep.subr.mxu0 0.0
    %163 = vmatpush2.msra.mxu0 0.0
    %164 = vmatprep.subr.mxu0 0.0
    %165 = vmatpush2.msra.mxu0 0.0
    %166 = vmatprep.subr.mxu0 0.0
    %167 = vmatpush2.msra.mxu0 0.0
    %168 = vmatprep.subr.mxu0 0.0
    %169 = vmatpush2.msra.mxu0 %v103
    %170 = vmatprep.subr.mxu0 0.0
    %171 = vmatpush2.msra.mxu0 %v102
    %172 = vmatprep.subr.mxu0 0.0
    %173 = vmatpush2.msra.mxu0 %v101
    %174 = vmatprep.subr.mxu0 0.0
    %175 = vmatpush2.msra.mxu0 %v100
    %176 = vmatprep.subr.mxu0 0.0
    %177 = vmatpush2.msra.mxu0 %v99
    %178 = vmatprep.subr.mxu0 0.0
    %179 = vmatpush2.msra.mxu0 %v98
    %180 = vmatprep.subr.mxu0 0.0
    %181 = vmatpush2.msra.mxu0 %v97
    %182 = vmatprep.subr.mxu0 0.0
    %183 = vmatpush2.msra.mxu0 %v96
    %184 = vmatprep.mubr.f32.mxu0 %v112
    %185 = vmatmul.mubr.f32.gmra.mxu0 %v104
    %v186 = vpop.f32.mrf.mxu0
    %v187 = vadd.f32 0.0, %v186
    %v188 = vpop.f32.mrf.mxu0
    %189 = vmatprep.mubr.f32.mxu0 %v115
    %190 = vmatmul.mubr.f32.gmra.mxu0 %v106
    %v191 = vpop.f32.mrf.mxu0
    %v192 = vadd.f32 0.0, %v191
    %v193 = vpop.f32.mrf.mxu0
    %194 = vmatprep.mubr.f32.mxu0 %v118
    %195 = vmatmul.mubr.f32.gmra.mxu0 %v108
    %v196 = vpop.f32.mrf.mxu0
    %v197 = vadd.f32 0.0, %v196
    %v198 = vpop.f32.mrf.mxu0
    %199 = vdwg.mxu0
    %v200 = vld [vmem:[%s2] sm:$0xff]
    %v201 = vld [vmem:[%s2 + $0x8] sm:$0xff]
    %v202 = vld [vmem:[%s2 + $0x10] sm:$0xff]
    %v203 = vld [vmem:[%s2 + $0x18] sm:$0xff]
    %v204 = vld [vmem:[%s2 + $0x20] sm:$0xff]
    %v205 = vld [vmem:[%s2 + $0x28] sm:$0xff]
    %vm206 = vcmask 392192
    %v208 = vsel %vm206, %v187, 0
    %v211 = vsel %vm206, %v192, 0
    %v214 = vsel %vm206, %v197, 0
    %216 = vmatprep.subr.mxu0 0.0
    %217 = vmatpush1.msra.mxu0 0.0
    %218 = vmatprep.subr.mxu0 0.0
    %219 = vmatpush1.msra.mxu0 0.0
    %220 = vmatprep.subr.mxu0 0.0
    %221 = vmatpush1.msra.mxu0 0.0
    %222 = vmatprep.subr.mxu0 0.0
    %223 = vmatpush1.msra.mxu0 0.0
    %224 = vmatprep.subr.mxu0 0.0
    %225 = vmatpush1.msra.mxu0 0.0
    %226 = vmatprep.subr.mxu0 0.0
    %227 = vmatpush1.msra.mxu0 0.0
    %228 = vmatprep.subr.mxu0 0.0
    %229 = vmatpush1.msra.mxu0 0.0
    %230 = vmatprep.subr.mxu0 0.0
    %231 = vmatpush1.msra.mxu0 0.0
    %232 = vmatprep.subr.mxu0 0.0
    %233 = vmatpush1.msra.mxu0 0.0
    %234 = vmatprep.subr.mxu0 0.0
    %235 = vmatpush1.msra.mxu0 0.0
    %236 = vmatprep.subr.mxu0 0.0
    %237 = vmatpush1.msra.mxu0 %v205
    %238 = vmatprep.subr.mxu0 0.0
    %239 = vmatpush1.msra.mxu0 %v204
    %240 = vmatprep.subr.mxu0 0.0
    %241 = vmatpush1.msra.mxu0 %v203
    %242 = vmatprep.subr.mxu0 0.0
    %243 = vmatpush1.msra.mxu0 %v202
    %244 = vmatprep.subr.mxu0 0.0
    %245 = vmatpush1.msra.mxu0 %v201
    %246 = vmatprep.subr.mxu0 0.0
    %247 = vmatpush1.msra.mxu0 %v200
    %248 = vmatprep.subr.mxu0 0.0
    %249 = vmatpush2.msra.mxu0 0.0
    %250 = vmatprep.subr.mxu0 0.0
    %251 = vmatpush2.msra.mxu0 0.0
    %252 = vmatprep.subr.mxu0 0.0
    %253 = vmatpush2.msra.mxu0 0.0
    %254 = vmatprep.subr.mxu0 0.0
    %255 = vmatpush2.msra.mxu0 0.0
    %256 = vmatprep.subr.mxu0 0.0
    %257 = vmatpush2.msra.mxu0 0.0
    %258 = vmatprep.subr.mxu0 0.0
    %259 = vmatpush2.msra.mxu0 0.0
    %260 = vmatprep.subr.mxu0 0.0
    %261 = vmatpush2.msra.mxu0 0.0
    %262 = vmatprep.subr.mxu0 0.0
    %263 = vmatpush2.msra.mxu0 0.0
    %264 = vmatprep.subr.mxu0 0.0
    %265 = vmatpush2.msra.mxu0 0.0
    %266 = vmatprep.subr.mxu0 0.0
    %267 = vmatpush2.msra.mxu0 0.0
    %268 = vmatprep.subr.mxu0 0.0
    %269 = vmatpush2.msra.mxu0 0.0
    %270 = vmatprep.subr.mxu0 0.0
    %271 = vmatpush2.msra.mxu0 0.0
    %272 = vmatprep.subr.mxu0 0.0
    %273 = vmatpush2.msra.mxu0 0.0
    %274 = vmatprep.subr.mxu0 0.0
    %275 = vmatpush2.msra.mxu0 0.0
    %276 = vmatprep.subr.mxu0 0.0
    %277 = vmatpush2.msra.mxu0 0.0
    %278 = vmatprep.subr.mxu0 0.0
    %279 = vmatpush2.msra.mxu0 0.0
    %280 = vmatprep.mubr.f32.mxu0 0.0
    %281 = vmatmul.mubr.f32.gmra.mxu0 %v208
    %v282 = vpop.f32.mrf.mxu0
    %v283 = vadd.f32 0.0, %v282
    %v284 = vpop.f32.mrf.mxu0
    %285 = vmatprep.mubr.f32.mxu0 0.0
    %286 = vmatmul.mubr.f32.gmra.mxu0 %v211
    %v287 = vpop.f32.mrf.mxu0
    %v288 = vadd.f32 0.0, %v287
    %v289 = vpop.f32.mrf.mxu0
    %290 = vmatprep.mubr.f32.mxu0 0.0
    %291 = vmatmul.mubr.f32.gmra.mxu0 %v214
    %v292 = vpop.f32.mrf.mxu0
    %v293 = vadd.f32 0.0, %v292
    %v294 = vpop.f32.mrf.mxu0
    %295 = vdwg.mxu0
    %v296 = vld [vmem:[%s3] sm:$0x1f]
    %vm297 = vcmask 39936
    %v299 = vsel %vm297, %v283, 0
    %v302 = vsel %vm297, %v288, 0
    %v305 = vsel %vm297, %v293, 0
    %vm307 = vcmask 1044480
    %v309 = vsel %vm307, %v296, 0
    %311 = vmatprep.subr.mxu0 0.0
    %312 = vmatpush1.msra.mxu0 0.0
    %313 = vmatprep.subr.mxu0 0.0
    %314 = vmatpush1.msra.mxu0 0.0
    %315 = vmatprep.subr.mxu0 0.0
    %316 = vmatpush1.msra.mxu0 0.0
    %317 = vmatprep.subr.mxu0 0.0
    %318 = vmatpush1.msra.mxu0 0.0
    %319 = vmatprep.subr.mxu0 0.0
    %320 = vmatpush1.msra.mxu0 0.0
    %321 = vmatprep.subr.mxu0 0.0
    %322 = vmatpush1.msra.mxu0 0.0
    %323 = vmatprep.subr.mxu0 0.0
    %324 = vmatpush1.msra.mxu0 0.0
    %325 = vmatprep.subr.mxu0 0.0
    %326 = vmatpush1.msra.mxu0 0.0
    %327 = vmatprep.subr.mxu0 0.0
    %328 = vmatpush1.msra.mxu0 0.0
    %329 = vmatprep.subr.mxu0 0.0
    %330 = vmatpush1.msra.mxu0 0.0
    %331 = vmatprep.subr.mxu0 0.0
    %332 = vmatpush1.msra.mxu0 0.0
    %333 = vmatprep.subr.mxu0 0.0
    %334 = vmatpush1.msra.mxu0 0.0
    %335 = vmatprep.subr.mxu0 0.0
    %336 = vmatpush1.msra.mxu0 0.0
    %337 = vmatprep.subr.mxu0 0.0
    %338 = vmatpush1.msra.mxu0 0.0
    %339 = vmatprep.subr.mxu0 0.0
    %340 = vmatpush1.msra.mxu0 0.0
    %341 = vmatprep.subr.mxu0 0.0
    %342 = vmatpush1.msra.mxu0 %v309
    %343 = vmatprep.subr.mxu0 0.0
    %344 = vmatpush2.msra.mxu0 0.0
    %345 = vmatprep.subr.mxu0 0.0
    %346 = vmatpush2.msra.mxu0 0.0
    %347 = vmatprep.subr.mxu0 0.0
    %348 = vmatpush2.msra.mxu0 0.0
    %349 = vmatprep.subr.mxu0 0.0
    %350 = vmatpush2.msra.mxu0 0.0
    %351 = vmatprep.subr.mxu0 0.0
    %352 = vmatpush2.msra.mxu0 0.0
    %353 = vmatprep.subr.mxu0 0.0
    %354 = vmatpush2.msra.mxu0 0.0
    %355 = vmatprep.subr.mxu0 0.0
    %356 = vmatpush2.msra.mxu0 0.0
    %357 = vmatprep.subr.mxu0 0.0
    %358 = vmatpush2.msra.mxu0 0.0
    %359 = vmatprep.subr.mxu0 0.0
    %360 = vmatpush2.msra.mxu0 0.0
    %361 = vmatprep.subr.mxu0 0.0
    %362 = vmatpush2.msra.mxu0 0.0
    %363 = vmatprep.subr.mxu0 0.0
    %364 = vmatpush2.msra.mxu0 0.0
    %365 = vmatprep.subr.mxu0 0.0
    %366 = vmatpush2.msra.mxu0 0.0
    %367 = vmatprep.subr.mxu0 0.0
    %368 = vmatpush2.msra.mxu0 0.0
    %369 = vmatprep.subr.mxu0 0.0
    %370 = vmatpush2.msra.mxu0 0.0
    %371 = vmatprep.subr.mxu0 0.0
    %372 = vmatpush2.msra.mxu0 0.0
    %373 = vmatprep.subr.mxu0 0.0
    %374 = vmatpush2.msra.mxu0 0.0
    %375 = vmatprep.mubr.f32.mxu0 0.0
    %376 = vmatmul.mubr.f32.gmra.mxu0 %v299
    %v377 = vpop.f32.mrf.mxu0
    %v378 = vadd.f32 0.0, %v377
    %v379 = vpop.f32.mrf.mxu0
    %380 = vmatprep.mubr.f32.mxu0 0.0
    %381 = vmatmul.mubr.f32.gmra.mxu0 %v302
    %v382 = vpop.f32.mrf.mxu0
    %v383 = vadd.f32 0.0, %v382
    %v384 = vpop.f32.mrf.mxu0
    %385 = vmatprep.mubr.f32.mxu0 0.0
    %386 = vmatmul.mubr.f32.gmra.mxu0 %v305
    %v387 = vpop.f32.mrf.mxu0
    %v388 = vadd.f32 0.0, %v387
    %v389 = vpop.f32.mrf.mxu0
    %390 = vdwg.mxu0
    %v391 = vld [vmem:[#allocation4] sm:$0xff]
    %v392 = vld [vmem:[#allocation4 + $0x8] sm:$0xff]
    %v393 = vld [vmem:[#allocation4 + $0x10] sm:$0xf]
    %v394 = vmul.f32 %v378, %v391
    %v395 = vmul.f32 %v383, %v392
    %v396 = vmul.f32 %v388, %v393
    %vm397 = vcmask 818176
    %v398 = vsel %vm397, %v394, 0.0
    %v399 = vsel %vm397, %v395, 0.0
    %v400 = vadd.f32 %v398, %v399
    %vm401 = vcmask 814080
    %v402 = vsel %vm401, %v396, 0.0
    %v403 = vadd.f32 %v400, %v402
    %v404 = vrot.slane %v403, 4
    %v405 = vadd.f32 %v403, %v404
    %v406 = vrot.slane %v405, 2
    %v407 = vadd.f32 %v405, %v406
    %v408 = vrot.slane %v407, 1
    %v409 = vadd.f32 %v407, %v408
    %v410 = vpack.c.bf16 %v409, %v409
    %v411 = vld [vmem:[#allocation6] sm:$0xff]
    %v412 = vld [vmem:[#allocation6 + $0x8] sm:$0xff]
    %v413 = vld [vmem:[#allocation6 + $0x10] sm:$0xff]
    %v414 = vld [vmem:[#allocation6 + $0x18] sm:$0xff]
    %v415 = vld [vmem:[#allocation6 + $0x20] sm:$0xff]
    %v416 = vld [vmem:[#allocation6 + $0x28] sm:$0xff]
    %v417 = vld [vmem:[#allocation6 + $0x30] sm:$0xff]
    %v418 = vld [vmem:[#allocation6 + $0x38] sm:$0xff]
    %v419 = vld [vmem:[#allocation6 + $0x40] sm:$0xff]
    %v420 = vld [vmem:[#allocation6 + $0x48] sm:$0xff]
    %v421 = vld [vmem:[#allocation6 + $0x50] sm:$0xff]
    %v422 = vld [vmem:[#allocation6 + $0x58] sm:$0xff]
    %v423 = vld [vmem:[#allocation6 + $0x60] sm:$0xff]
    %v424 = vld [vmem:[#allocation6 + $0x68] sm:$0xff]
    %v425 = vld [vmem:[#allocation6 + $0x70] sm:$0xff]
    %v426 = vld [vmem:[#allocation6 + $0x78] sm:$0xff]
    %v427 = vld [vmem:[#allocation6 + $0x80] sm:$0xff]
    %v428 = vld [vmem:[#allocation6 + $0x88] sm:$0xff]
    %v429 = vld [vmem:[#allocation6 + $0x90] sm:$0xff]
    %v430 = vld [vmem:[#allocation6 + $0x98] sm:$0xff]
    %v431 = vld [vmem:[#allocation6 + $0xa0] sm:$0xff]
    %v432 = vld [vmem:[#allocation6 + $0xa8] sm:$0xff]
    %v433 = vld [vmem:[#allocation6 + $0xb0] sm:$0xff]
    %v434 = vld [vmem:[#allocation6 + $0xb8] sm:$0xff]
    %v435 = vld [vmem:[#allocation6 + $0xc0] sm:$0xff]
    %v436 = vld [vmem:[#allocation6 + $0xc8] sm:$0xff]
    %v437 = vld [vmem:[#allocation6 + $0xd0] sm:$0xff]
    %v438 = vld [vmem:[#allocation6 + $0xd8] sm:$0xff]
    %v439 = vld [vmem:[#allocation6 + $0xe0] sm:$0xff]
    %v440 = vld [vmem:[#allocation6 + $0xe8] sm:$0xff]
    %v441 = vld [vmem:[#allocation6 + $0xf0] sm:$0xff]
    %v442 = vld [vmem:[#allocation6 + $0xf8] sm:$0xff]
    %v443 = vld [vmem:[#allocation6 + $0x100] sm:$0xff]
    %v444 = vld [vmem:[#allocation6 + $0x108] sm:$0xff]
    %v445 = vld [vmem:[#allocation6 + $0x110] sm:$0xff]
    %v446 = vld [vmem:[#allocation6 + $0x118] sm:$0xff]
    %v447 = vld [vmem:[#allocation6 + $0x120] sm:$0xff]
    %v448 = vld [vmem:[#allocation6 + $0x128] sm:$0xff]
    %v449 = vld [vmem:[#allocation6 + $0x130] sm:$0xff]
    %v450 = vld [vmem:[#allocation6 + $0x138] sm:$0xff]
    %v451 = vld [vmem:[#allocation6 + $0x140] sm:$0xff]
    %v452 = vld [vmem:[#allocation6 + $0x148] sm:$0xff]
    %v453 = vld [vmem:[#allocation6 + $0x150] sm:$0xff]
    %v454 = vld [vmem:[#allocation6 + $0x158] sm:$0xff]
    %v455 = vld [vmem:[#allocation6 + $0x160] sm:$0xff]
    %v456 = vld [vmem:[#allocation6 + $0x168] sm:$0xff]
    %v457 = vld [vmem:[#allocation6 + $0x170] sm:$0xff]
    %v458 = vld [vmem:[#allocation6 + $0x178] sm:$0xff]
    %v459 = vld [vmem:[#allocation6 + $0x180] sm:$0xff]
    %v460 = vld [vmem:[#allocation6 + $0x188] sm:$0xff]
    %v461 = vld [vmem:[#allocation6 + $0x190] sm:$0xff]
    %v462 = vld [vmem:[#allocation6 + $0x198] sm:$0xff]
    %v463 = vld [vmem:[#allocation6 + $0x1a0] sm:$0xff]
    %v464 = vld [vmem:[#allocation6 + $0x1a8] sm:$0xff]
    %v465 = vld [vmem:[#allocation6 + $0x1b0] sm:$0xff]
    %v466 = vld [vmem:[#allocation6 + $0x1b8] sm:$0xff]
    %v467 = vld [vmem:[#allocation6 + $0x1c0] sm:$0xff]
    %v468 = vld [vmem:[#allocation6 + $0x1c8] sm:$0xff]
    %v469 = vld [vmem:[#allocation6 + $0x1d0] sm:$0xff]
    %v470 = vld [vmem:[#allocation6 + $0x1d8] sm:$0xff]
    %v471 = vld [vmem:[#allocation6 + $0x1e0] sm:$0xff]
    %v472 = vld [vmem:[#allocation6 + $0x1e8] sm:$0xff]
    %v473 = vld [vmem:[#allocation6 + $0x1f0] sm:$0xff]
    %v474 = vld [vmem:[#allocation6 + $0x1f8] sm:$0xff]
    %v475 = vld [vmem:[#allocation6 + $0x200] sm:$0xff]
    %v476 = vld [vmem:[#allocation6 + $0x208] sm:$0xff]
    %v477 = vld [vmem:[#allocation6 + $0x210] sm:$0xff]
    %v478 = vld [vmem:[#allocation6 + $0x218] sm:$0xff]
    %v479 = vld [vmem:[#allocation6 + $0x220] sm:$0xff]
    %v480 = vld [vmem:[#allocation6 + $0x228] sm:$0xff]
    %v481 = vld [vmem:[#allocation6 + $0x230] sm:$0xff]
    %v482 = vld [vmem:[#allocation6 + $0x238] sm:$0xff]
    %v483 = vld [vmem:[#allocation6 + $0x240] sm:$0xff]
    %v484 = vld [vmem:[#allocation6 + $0x248] sm:$0xff]
    %v485 = vld [vmem:[#allocation6 + $0x250] sm:$0xff]
    %v486 = vld [vmem:[#allocation6 + $0x258] sm:$0xff]
    %v487 = vld [vmem:[#allocation6 + $0x260] sm:$0xff]
    %v488 = vld [vmem:[#allocation6 + $0x268] sm:$0xff]
    %v489 = vld [vmem:[#allocation6 + $0x270] sm:$0xff]
    %v490 = vld [vmem:[#allocation6 + $0x278] sm:$0xff]
    %v491 = vld [vmem:[#allocation6 + $0x280] sm:$0xff]
    %v492 = vld [vmem:[#allocation6 + $0x288] sm:$0xff]
    %v493 = vld [vmem:[#allocation6 + $0x290] sm:$0xff]
    %v494 = vld [vmem:[#allocation6 + $0x298] sm:$0xff]
    %v495 = vld [vmem:[#allocation6 + $0x2a0] sm:$0xff]
    %v496 = vld [vmem:[#allocation6 + $0x2a8] sm:$0xff]
    %v497 = vld [vmem:[#allocation6 + $0x2b0] sm:$0xff]
    %v498 = vld [vmem:[#allocation6 + $0x2b8] sm:$0xff]
    %v499 = vld [vmem:[#allocation6 + $0x2c0] sm:$0xff]
    %v500 = vld [vmem:[#allocation6 + $0x2c8] sm:$0xff]
    %v501 = vld [vmem:[#allocation6 + $0x2d0] sm:$0xff]
    %v502 = vld [vmem:[#allocation6 + $0x2d8] sm:$0xff]
    %v503 = vld [vmem:[#allocation6 + $0x2e0] sm:$0xff]
    %v504 = vld [vmem:[#allocation6 + $0x2e8] sm:$0xff]
    %v505 = vld [vmem:[#allocation6 + $0x2f0] sm:$0xff]
    %v506 = vld [vmem:[#allocation6 + $0x2f8] sm:$0xff]
    %v507 = vld [vmem:[#allocation6 + $0x300] sm:$0xff]
    %v508 = vld [vmem:[#allocation6 + $0x308] sm:$0xff]
    %v509 = vld [vmem:[#allocation6 + $0x310] sm:$0xff]
    %v510 = vld [vmem:[#allocation6 + $0x318] sm:$0xff]
    %v511 = vld [vmem:[#allocation6 + $0x320] sm:$0xff]
    %v512 = vld [vmem:[#allocation6 + $0x328] sm:$0xff]
    %v513 = vld [vmem:[#allocation6 + $0x330] sm:$0xff]
    %v514 = vld [vmem:[#allocation6 + $0x338] sm:$0xff]
    %v515 = vld [vmem:[#allocation6 + $0x340] sm:$0xff]
    %v516 = vld [vmem:[#allocation6 + $0x348] sm:$0xff]
    %v517 = vld [vmem:[#allocation6 + $0x350] sm:$0xff]
    %v518 = vld [vmem:[#allocation6 + $0x358] sm:$0xff]
    %v519 = vld [vmem:[#allocation6 + $0x360] sm:$0xff]
    %v520 = vld [vmem:[#allocation6 + $0x368] sm:$0xff]
    %v521 = vld [vmem:[#allocation6 + $0x370] sm:$0xff]
    %v522 = vld [vmem:[#allocation6 + $0x378] sm:$0xff]
    %v523 = vld [vmem:[#allocation6 + $0x380] sm:$0xff]
    %v524 = vld [vmem:[#allocation6 + $0x388] sm:$0xff]
    %v525 = vld [vmem:[#allocation6 + $0x390] sm:$0xff]
    %v526 = vld [vmem:[#allocation6 + $0x398] sm:$0xff]
    %v527 = vld [vmem:[#allocation6 + $0x3a0] sm:$0xff]
    %v528 = vld [vmem:[#allocation6 + $0x3a8] sm:$0xff]
    %v529 = vld [vmem:[#allocation6 + $0x3b0] sm:$0xff]
    %v530 = vld [vmem:[#allocation6 + $0x3b8] sm:$0xff]
    %v531 = vld [vmem:[#allocation6 + $0x3c0] sm:$0xff]
    %v532 = vld [vmem:[#allocation6 + $0x3c8] sm:$0xff]
    %v533 = vld [vmem:[#allocation6 + $0x3d0] sm:$0xff]
    %v534 = vld [vmem:[#allocation6 + $0x3d8] sm:$0xff]
    %v535 = vld [vmem:[#allocation6 + $0x3e0] sm:$0xff]
    %v536 = vld [vmem:[#allocation6 + $0x3e8] sm:$0xff]
    %v537 = vld [vmem:[#allocation6 + $0x3f0] sm:$0xff]
    %v538 = vld [vmem:[#allocation6 + $0x3f8] sm:$0xff]
    %v539 = vld [vmem:[#allocation6 + $0x400] sm:$0xff]
    %v540 = vld [vmem:[#allocation6 + $0x408] sm:$0xff]
    %v541 = vld [vmem:[#allocation6 + $0x410] sm:$0xff]
    %v542 = vld [vmem:[#allocation6 + $0x418] sm:$0xff]
    %v543 = vld [vmem:[#allocation6 + $0x420] sm:$0xff]
    %v544 = vld [vmem:[#allocation6 + $0x428] sm:$0xff]
    %v545 = vld [vmem:[#allocation6 + $0x430] sm:$0xff]
    %v546 = vld [vmem:[#allocation6 + $0x438] sm:$0xff]
    %v547 = vld [vmem:[#allocation6 + $0x440] sm:$0xff]
    %v548 = vld [vmem:[#allocation6 + $0x448] sm:$0xff]
    %v549 = vld [vmem:[#allocation6 + $0x450] sm:$0xff]
    %v550 = vld [vmem:[#allocation6 + $0x458] sm:$0xff]
    %v551 = vld [vmem:[#allocation6 + $0x460] sm:$0xff]
    %v552 = vld [vmem:[#allocation6 + $0x468] sm:$0xff]
    %v553 = vld [vmem:[#allocation6 + $0x470] sm:$0xff]
    %v554 = vld [vmem:[#allocation6 + $0x478] sm:$0xff]
    %v555 = vld [vmem:[#allocation6 + $0x480] sm:$0x33]
    %v556 = vld [vmem:[#allocation6 + $0x488] sm:$0x33]
    %v557 = vld [vmem:[#allocation6 + $0x490] sm:$0x33]
    %v558 = vld [vmem:[#allocation6 + $0x498] sm:$0x33]
    %v559 = vld [vmem:[#allocation6 + $0x4a0] sm:$0x33]
    %v560 = vld [vmem:[#allocation6 + $0x4a8] sm:$0x33]
    %v561 = vld [vmem:[#allocation6 + $0x4b0] sm:$0x33]
    %v562 = vld [vmem:[#allocation6 + $0x4b8] sm:$0x33]
    %v563 = vld [vmem:[#allocation6 + $0x4c0] sm:$0x33]
    %v564 = vld [vmem:[#allocation6 + $0x4c8] sm:$0x33]
    %v565 = vld [vmem:[#allocation6 + $0x4d0] sm:$0x33]
    %v566 = vld [vmem:[#allocation6 + $0x4d8] sm:$0x33]
    %v567 = vld [vmem:[#allocation7] sm:$0xff]
    %v568 = vld [vmem:[#allocation7 + $0x8] sm:$0xff]
    %v569 = vld [vmem:[#allocation7 + $0x10] sm:$0xff]
    %v726 = vunpack.c.l.b16 %v411
    %v727 = vunpack.c.h.b16 %v411
    %v728 = vunpack.c.l.b16 %v412
    %v729 = vunpack.c.h.b16 %v412
    %v730 = vunpack.c.l.b16 %v413
    %v731 = vunpack.c.h.b16 %v413
    %v732 = vunpack.c.l.b16 %v414
    %v733 = vunpack.c.h.b16 %v414
    %v734 = vunpack.c.l.b16 %v415
    %v735 = vunpack.c.h.b16 %v415
    %v736 = vunpack.c.l.b16 %v416
    %v737 = vunpack.c.h.b16 %v416
    %v738 = vunpack.c.l.b16 %v417
    %v739 = vunpack.c.h.b16 %v417
    %v740 = vunpack.c.l.b16 %v418
    %v741 = vunpack.c.h.b16 %v418
    %v742 = vunpack.c.l.b16 %v419
    %v743 = vunpack.c.h.b16 %v419
    %v744 = vunpack.c.l.b16 %v420
    %v745 = vunpack.c.h.b16 %v420
    %v746 = vunpack.c.l.b16 %v421
    %v747 = vunpack.c.h.b16 %v421
    %v748 = vunpack.c.l.b16 %v422
    %v749 = vunpack.c.h.b16 %v422
    %v750 = vunpack.c.l.b16 %v423
    %v751 = vunpack.c.h.b16 %v423
    %v752 = vunpack.c.l.b16 %v424
    %v753 = vunpack.c.h.b16 %v424
    %v754 = vunpack.c.l.b16 %v425
    %v755 = vunpack.c.h.b16 %v425
    %v756 = vunpack.c.l.b16 %v426
    %v757 = vunpack.c.h.b16 %v426
    %v758 = vunpack.c.l.b16 %v427
    %v759 = vunpack.c.h.b16 %v427
    %v760 = vunpack.c.l.b16 %v428
    %v761 = vunpack.c.h.b16 %v428
    %v762 = vunpack.c.l.b16 %v429
    %v763 = vunpack.c.h.b16 %v429
    %v764 = vunpack.c.l.b16 %v430
    %v765 = vunpack.c.h.b16 %v430
    %v766 = vunpack.c.l.b16 %v431
    %v767 = vunpack.c.h.b16 %v431
    %v768 = vunpack.c.l.b16 %v432
    %v769 = vunpack.c.h.b16 %v432
    %v770 = vunpack.c.l.b16 %v433
    %v771 = vunpack.c.h.b16 %v433
    %v772 = vunpack.c.l.b16 %v434
    %v773 = vunpack.c.h.b16 %v434
    %v774 = vunpack.c.l.b16 %v435
    %v775 = vunpack.c.h.b16 %v435
    %v776 = vunpack.c.l.b16 %v436
    %v777 = vunpack.c.h.b16 %v436
    %v778 = vunpack.c.l.b16 %v437
    %v779 = vunpack.c.h.b16 %v437
    %v780 = vunpack.c.l.b16 %v438
    %v781 = vunpack.c.h.b16 %v438
    %v782 = vunpack.c.l.b16 %v439
    %v783 = vunpack.c.h.b16 %v439
    %v784 = vunpack.c.l.b16 %v440
    %v785 = vunpack.c.h.b16 %v440
    %v786 = vunpack.c.l.b16 %v441
    %v787 = vunpack.c.h.b16 %v441
    %v788 = vunpack.c.l.b16 %v442
    %v789 = vunpack.c.h.b16 %v442
    %v790 = vunpack.c.l.b16 %v443
    %v791 = vunpack.c.h.b16 %v443
    %v792 = vunpack.c.l.b16 %v444
    %v793 = vunpack.c.h.b16 %v444
    %v794 = vunpack.c.l.b16 %v445
    %v795 = vunpack.c.h.b16 %v445
    %v796 = vunpack.c.l.b16 %v446
    %v797 = vunpack.c.h.b16 %v446
    %v798 = vunpack.c.l.b16 %v447
    %v799 = vunpack.c.h.b16 %v447
    %v800 = vunpack.c.l.b16 %v448
    %v801 = vunpack.c.h.b16 %v448
    %v802 = vunpack.c.l.b16 %v449
    %v803 = vunpack.c.h.b16 %v449
    %v804 = vunpack.c.l.b16 %v450
    %v805 = vunpack.c.h.b16 %v450
    %v806 = vunpack.c.l.b16 %v451
    %v807 = vunpack.c.h.b16 %v451
    %v808 = vunpack.c.l.b16 %v452
    %v809 = vunpack.c.h.b16 %v452
    %v810 = vunpack.c.l.b16 %v453
    %v811 = vunpack.c.h.b16 %v453
    %v812 = vunpack.c.l.b16 %v454
    %v813 = vunpack.c.h.b16 %v454
    %v814 = vunpack.c.l.b16 %v455
    %v815 = vunpack.c.h.b16 %v455
    %v816 = vunpack.c.l.b16 %v456
    %v817 = vunpack.c.h.b16 %v456
    %v818 = vunpack.c.l.b16 %v457
    %v819 = vunpack.c.h.b16 %v457
    %v820 = vunpack.c.l.b16 %v458
    %v821 = vunpack.c.h.b16 %v458
    %v822 = vunpack.c.l.b16 %v459
    %v823 = vunpack.c.h.b16 %v459
    %v824 = vunpack.c.l.b16 %v460
    %v825 = vunpack.c.h.b16 %v460
    %v826 = vunpack.c.l.b16 %v461
    %v827 = vunpack.c.h.b16 %v461
    %v828 = vunpack.c.l.b16 %v462
    %v829 = vunpack.c.h.b16 %v462
    %v830 = vunpack.c.l.b16 %v463
    %v831 = vunpack.c.h.b16 %v463
    %v832 = vunpack.c.l.b16 %v464
    %v833 = vunpack.c.h.b16 %v464
    %v834 = vunpack.c.l.b16 %v465
    %v835 = vunpack.c.h.b16 %v465
    %v836 = vunpack.c.l.b16 %v466
    %v837 = vunpack.c.h.b16 %v466
    %v838 = vunpack.c.l.b16 %v467
    %v839 = vunpack.c.h.b16 %v467
    %v840 = vunpack.c.l.b16 %v468
    %v841 = vunpack.c.h.b16 %v468
    %v842 = vunpack.c.l.b16 %v469
    %v843 = vunpack.c.h.b16 %v469
    %v844 = vunpack.c.l.b16 %v470
    %v845 = vunpack.c.h.b16 %v470
    %v846 = vunpack.c.l.b16 %v471
    %v847 = vunpack.c.h.b16 %v471
    %v848 = vunpack.c.l.b16 %v472
    %v849 = vunpack.c.h.b16 %v472
    %v850 = vunpack.c.l.b16 %v473
    %v851 = vunpack.c.h.b16 %v473
    %v852 = vunpack.c.l.b16 %v474
    %v853 = vunpack.c.h.b16 %v474
    %v854 = vunpack.c.l.b16 %v475
    %v855 = vunpack.c.h.b16 %v475
    %v856 = vunpack.c.l.b16 %v476
    %v857 = vunpack.c.h.b16 %v476
    %v858 = vunpack.c.l.b16 %v477
    %v859 = vunpack.c.h.b16 %v477
    %v860 = vunpack.c.l.b16 %v478
    %v861 = vunpack.c.h.b16 %v478
    %v862 = vunpack.c.l.b16 %v479
    %v863 = vunpack.c.h.b16 %v479
    %v864 = vunpack.c.l.b16 %v480
    %v865 = vunpack.c.h.b16 %v480
    %v866 = vunpack.c.l.b16 %v481
    %v867 = vunpack.c.h.b16 %v481
    %v868 = vunpack.c.l.b16 %v482
    %v869 = vunpack.c.h.b16 %v482
    %v870 = vunpack.c.l.b16 %v483
    %v871 = vunpack.c.h.b16 %v483
    %v872 = vunpack.c.l.b16 %v484
    %v873 = vunpack.c.h.b16 %v484
    %v874 = vunpack.c.l.b16 %v485
    %v875 = vunpack.c.h.b16 %v485
    %v876 = vunpack.c.l.b16 %v486
    %v877 = vunpack.c.h.b16 %v486
    %v878 = vunpack.c.l.b16 %v487
    %v879 = vunpack.c.h.b16 %v487
    %v880 = vunpack.c.l.b16 %v488
    %v881 = vunpack.c.h.b16 %v488
    %v882 = vunpack.c.l.b16 %v489
    %v883 = vunpack.c.h.b16 %v489
    %v884 = vunpack.c.l.b16 %v490
    %v885 = vunpack.c.h.b16 %v490
    %v886 = vunpack.c.l.b16 %v491
    %v887 = vunpack.c.h.b16 %v491
    %v888 = vunpack.c.l.b16 %v492
    %v889 = vunpack.c.h.b16 %v492
    %v890 = vunpack.c.l.b16 %v493
    %v891 = vunpack.c.h.b16 %v493
    %v892 = vunpack.c.l.b16 %v494
    %v893 = vunpack.c.h.b16 %v494
    %v894 = vunpack.c.l.b16 %v495
    %v895 = vunpack.c.h.b16 %v495
    %v896 = vunpack.c.l.b16 %v496
    %v897 = vunpack.c.h.b16 %v496
    %v898 = vunpack.c.l.b16 %v497
    %v899 = vunpack.c.h.b16 %v497
    %v900 = vunpack.c.l.b16 %v498
    %v901 = vunpack.c.h.b16 %v498
    %v902 = vunpack.c.l.b16 %v499
    %v903 = vunpack.c.h.b16 %v499
    %v904 = vunpack.c.l.b16 %v500
    %v905 = vunpack.c.h.b16 %v500
    %v906 = vunpack.c.l.b16 %v501
    %v907 = vunpack.c.h.b16 %v501
    %v908 = vunpack.c.l.b16 %v502
    %v909 = vunpack.c.h.b16 %v502
    %v910 = vunpack.c.l.b16 %v503
    %v911 = vunpack.c.h.b16 %v503
    %v912 = vunpack.c.l.b16 %v504
    %v913 = vunpack.c.h.b16 %v504
    %v914 = vunpack.c.l.b16 %v505
    %v915 = vunpack.c.h.b16 %v505
    %v916 = vunpack.c.l.b16 %v506
    %v917 = vunpack.c.h.b16 %v506
    %v918 = vunpack.c.l.b16 %v507
    %v919 = vunpack.c.h.b16 %v507
    %v920 = vunpack.c.l.b16 %v508
    %v921 = vunpack.c.h.b16 %v508
    %v922 = vunpack.c.l.b16 %v509
    %v923 = vunpack.c.h.b16 %v509
    %v924 = vunpack.c.l.b16 %v510
    %v925 = vunpack.c.h.b16 %v510
    %v926 = vunpack.c.l.b16 %v511
    %v927 = vunpack.c.h.b16 %v511
    %v928 = vunpack.c.l.b16 %v512
    %v929 = vunpack.c.h.b16 %v512
    %v930 = vunpack.c.l.b16 %v513
    %v931 = vunpack.c.h.b16 %v513
    %v932 = vunpack.c.l.b16 %v514
    %v933 = vunpack.c.h.b16 %v514
    %v934 = vunpack.c.l.b16 %v515
    %v935 = vunpack.c.h.b16 %v515
    %v936 = vunpack.c.l.b16 %v516
    %v937 = vunpack.c.h.b16 %v516
    %v938 = vunpack.c.l.b16 %v517
    %v939 = vunpack.c.h.b16 %v517
    %v940 = vunpack.c.l.b16 %v518
    %v941 = vunpack.c.h.b16 %v518
    %v942 = vunpack.c.l.b16 %v519
    %v943 = vunpack.c.h.b16 %v519
    %v944 = vunpack.c.l.b16 %v520
    %v945 = vunpack.c.h.b16 %v520
    %v946 = vunpack.c.l.b16 %v521
    %v947 = vunpack.c.h.b16 %v521
    %v948 = vunpack.c.l.b16 %v522
    %v949 = vunpack.c.h.b16 %v522
    %v950 = vunpack.c.l.b16 %v523
    %v951 = vunpack.c.h.b16 %v523
    %v952 = vunpack.c.l.b16 %v524
    %v953 = vunpack.c.h.b16 %v524
    %v954 = vunpack.c.l.b16 %v525
    %v955 = vunpack.c.h.b16 %v525
    %v956 = vunpack.c.l.b16 %v526
    %v957 = vunpack.c.h.b16 %v526
    %v958 = vunpack.c.l.b16 %v527
    %v959 = vunpack.c.h.b16 %v527
    %v960 = vunpack.c.l.b16 %v528
    %v961 = vunpack.c.h.b16 %v528
    %v962 = vunpack.c.l.b16 %v529
    %v963 = vunpack.c.h.b16 %v529
    %v964 = vunpack.c.l.b16 %v530
    %v965 = vunpack.c.h.b16 %v530
    %v966 = vunpack.c.l.b16 %v531
    %v967 = vunpack.c.h.b16 %v531
    %v968 = vunpack.c.l.b16 %v532
    %v969 = vunpack.c.h.b16 %v532
    %v970 = vunpack.c.l.b16 %v533
    %v971 = vunpack.c.h.b16 %v533
    %v972 = vunpack.c.l.b16 %v534
    %v973 = vunpack.c.h.b16 %v534
    %v974 = vunpack.c.l.b16 %v535
    %v975 = vunpack.c.h.b16 %v535
    %v976 = vunpack.c.l.b16 %v536
    %v977 = vunpack.c.h.b16 %v536
    %v978 = vunpack.c.l.b16 %v537
    %v979 = vunpack.c.h.b16 %v537
    %v980 = vunpack.c.l.b16 %v538
    %v981 = vunpack.c.h.b16 %v538
    %v982 = vunpack.c.l.b16 %v539
    %v983 = vunpack.c.h.b16 %v539
    %v984 = vunpack.c.l.b16 %v540
    %v985 = vunpack.c.h.b16 %v540
    %v986 = vunpack.c.l.b16 %v541
    %v987 = vunpack.c.h.b16 %v541
    %v988 = vunpack.c.l.b16 %v542
    %v989 = vunpack.c.h.b16 %v542
    %v990 = vunpack.c.l.b16 %v543
    %v991 = vunpack.c.h.b16 %v543
    %v992 = vunpack.c.l.b16 %v544
    %v993 = vunpack.c.h.b16 %v544
    %v994 = vunpack.c.l.b16 %v545
    %v995 = vunpack.c.h.b16 %v545
    %v996 = vunpack.c.l.b16 %v546
    %v997 = vunpack.c.h.b16 %v546
    %v998 = vunpack.c.l.b16 %v547
    %v999 = vunpack.c.h.b16 %v547
    %v1000 = vunpack.c.l.b16 %v548
    %v1001 = vunpack.c.h.b16 %v548
    %v1002 = vunpack.c.l.b16 %v549
    %v1003 = vunpack.c.h.b16 %v549
    %v1004 = vunpack.c.l.b16 %v550
    %v1005 = vunpack.c.h.b16 %v550
    %v1006 = vunpack.c.l.b16 %v551
    %v1007 = vunpack.c.h.b16 %v551
    %v1008 = vunpack.c.l.b16 %v552
    %v1009 = vunpack.c.h.b16 %v552
    %v1010 = vunpack.c.l.b16 %v553
    %v1011 = vunpack.c.h.b16 %v553
    %v1012 = vunpack.c.l.b16 %v554
    %v1013 = vunpack.c.h.b16 %v554
    %v1014 = vunpack.c.l.b16 %v555
    %v1015 = vunpack.c.h.b16 %v555
    %v1016 = vunpack.c.l.b16 %v556
    %v1017 = vunpack.c.h.b16 %v556
    %v1018 = vunpack.c.l.b16 %v557
    %v1019 = vunpack.c.h.b16 %v557
    %v1020 = vunpack.c.l.b16 %v558
    %v1021 = vunpack.c.h.b16 %v558
    %v1022 = vunpack.c.l.b16 %v559
    %v1023 = vunpack.c.h.b16 %v559
    %v1024 = vunpack.c.l.b16 %v560
    %v1025 = vunpack.c.h.b16 %v560
    %v1026 = vunpack.c.l.b16 %v561
    %v1027 = vunpack.c.h.b16 %v561
    %v1028 = vunpack.c.l.b16 %v562
    %v1029 = vunpack.c.h.b16 %v562
    %v1030 = vunpack.c.l.b16 %v563
    %v1031 = vunpack.c.h.b16 %v563
    %v1032 = vunpack.c.l.b16 %v564
    %v1033 = vunpack.c.h.b16 %v564
    %v1034 = vunpack.c.l.b16 %v565
    %v1035 = vunpack.c.h.b16 %v565
    %v1036 = vunpack.c.l.b16 %v566
    %v1037 = vunpack.c.h.b16 %v566
    %v1038 = vpack.c.b16 %v750, %v726
    %v1039 = vpack.c.b16 %v751, %v727
    %v1040 = vpack.c.b16 %v752, %v728
    %v1041 = vpack.c.b16 %v753, %v729
    %v1042 = vpack.c.b16 %v754, %v730
    %v1043 = vpack.c.b16 %v755, %v731
    %v1044 = vpack.c.b16 %v756, %v732
    %v1045 = vpack.c.b16 %v757, %v733
    %v1046 = vpack.c.b16 %v758, %v734
    %v1047 = vpack.c.b16 %v759, %v735
    %v1048 = vpack.c.b16 %v760, %v736
    %v1049 = vpack.c.b16 %v761, %v737
    %v1050 = vpack.c.b16 %v762, %v738
    %v1051 = vpack.c.b16 %v763, %v739
    %v1052 = vpack.c.b16 %v764, %v740
    %v1053 = vpack.c.b16 %v765, %v741
    %v1054 = vpack.c.b16 %v766, %v742
    %v1055 = vpack.c.b16 %v767, %v743
    %v1056 = vpack.c.b16 %v768, %v744
    %v1057 = vpack.c.b16 %v769, %v745
    %v1058 = vpack.c.b16 %v770, %v746
    %v1059 = vpack.c.b16 %v771, %v747
    %v1060 = vpack.c.b16 %v772, %v748
    %v1061 = vpack.c.b16 %v773, %v749
    %v1062 = vpack.c.b16 %v798, %v774
    %v1063 = vpack.c.b16 %v799, %v775
    %v1064 = vpack.c.b16 %v800, %v776
    %v1065 = vpack.c.b16 %v801, %v777
    %v1066 = vpack.c.b16 %v802, %v778
    %v1067 = vpack.c.b16 %v803, %v779
    %v1068 = vpack.c.b16 %v804, %v780
    %v1069 = vpack.c.b16 %v805, %v781
    %v1070 = vpack.c.b16 %v806, %v782
    %v1071 = vpack.c.b16 %v807, %v783
    %v1072 = vpack.c.b16 %v808, %v784
    %v1073 = vpack.c.b16 %v809, %v785
    %v1074 = vpack.c.b16 %v810, %v786
    %v1075 = vpack.c.b16 %v811, %v787
    %v1076 = vpack.c.b16 %v812, %v788
    %v1077 = vpack.c.b16 %v813, %v789
    %v1078 = vpack.c.b16 %v814, %v790
    %v1079 = vpack.c.b16 %v815, %v791
    %v1080 = vpack.c.b16 %v816, %v792
    %v1081 = vpack.c.b16 %v817, %v793
    %v1082 = vpack.c.b16 %v818, %v794
    %v1083 = vpack.c.b16 %v819, %v795
    %v1084 = vpack.c.b16 %v820, %v796
    %v1085 = vpack.c.b16 %v821, %v797
    %v1086 = vpack.c.b16 %v846, %v822
    %v1087 = vpack.c.b16 %v847, %v823
    %v1088 = vpack.c.b16 %v848, %v824
    %v1089 = vpack.c.b16 %v849, %v825
    %v1090 = vpack.c.b16 %v850, %v826
    %v1091 = vpack.c.b16 %v851, %v827
    %v1092 = vpack.c.b16 %v852, %v828
    %v1093 = vpack.c.b16 %v853, %v829
    %v1094 = vpack.c.b16 %v854, %v830
    %v1095 = vpack.c.b16 %v855, %v831
    %v1096 = vpack.c.b16 %v856, %v832
    %v1097 = vpack.c.b16 %v857, %v833
    %v1098 = vpack.c.b16 %v858, %v834
    %v1099 = vpack.c.b16 %v859, %v835
    %v1100 = vpack.c.b16 %v860, %v836
    %v1101 = vpack.c.b16 %v861, %v837
    %v1102 = vpack.c.b16 %v862, %v838
    %v1103 = vpack.c.b16 %v863, %v839
    %v1104 = vpack.c.b16 %v864, %v840
    %v1105 = vpack.c.b16 %v865, %v841
    %v1106 = vpack.c.b16 %v866, %v842
    %v1107 = vpack.c.b16 %v867, %v843
    %v1108 = vpack.c.b16 %v868, %v844
    %v1109 = vpack.c.b16 %v869, %v845
    %v1110 = vpack.c.b16 %v894, %v870
    %v1111 = vpack.c.b16 %v895, %v871
    %v1112 = vpack.c.b16 %v896, %v872
    %v1113 = vpack.c.b16 %v897, %v873
    %v1114 = vpack.c.b16 %v898, %v874
    %v1115 = vpack.c.b16 %v899, %v875
    %v1116 = vpack.c.b16 %v900, %v876
    %v1117 = vpack.c.b16 %v901, %v877
    %v1118 = vpack.c.b16 %v902, %v878
    %v1119 = vpack.c.b16 %v903, %v879
    %v1120 = vpack.c.b16 %v904, %v880
    %v1121 = vpack.c.b16 %v905, %v881
    %v1122 = vpack.c.b16 %v906, %v882
    %v1123 = vpack.c.b16 %v907, %v883
    %v1124 = vpack.c.b16 %v908, %v884
    %v1125 = vpack.c.b16 %v909, %v885
    %v1126 = vpack.c.b16 %v910, %v886
    %v1127 = vpack.c.b16 %v911, %v887
    %v1128 = vpack.c.b16 %v912, %v888
    %v1129 = vpack.c.b16 %v913, %v889
    %v1130 = vpack.c.b16 %v914, %v890
    %v1131 = vpack.c.b16 %v915, %v891
    %v1132 = vpack.c.b16 %v916, %v892
    %v1133 = vpack.c.b16 %v917, %v893
    %v1134 = vpack.c.b16 %v942, %v918
    %v1135 = vpack.c.b16 %v943, %v919
    %v1136 = vpack.c.b16 %v944, %v920
    %v1137 = vpack.c.b16 %v945, %v921
    %v1138 = vpack.c.b16 %v946, %v922
    %v1139 = vpack.c.b16 %v947, %v923
    %v1140 = vpack.c.b16 %v948, %v924
    %v1141 = vpack.c.b16 %v949, %v925
    %v1142 = vpack.c.b16 %v950, %v926
    %v1143 = vpack.c.b16 %v951, %v927
    %v1144 = vpack.c.b16 %v952, %v928
    %v1145 = vpack.c.b16 %v953, %v929
    %v1146 = vpack.c.b16 %v954, %v930
    %v1147 = vpack.c.b16 %v955, %v931
    %v1148 = vpack.c.b16 %v956, %v932
    %v1149 = vpack.c.b16 %v957, %v933
    %v1150 = vpack.c.b16 %v958, %v934
    %v1151 = vpack.c.b16 %v959, %v935
    %v1152 = vpack.c.b16 %v960, %v936
    %v1153 = vpack.c.b16 %v961, %v937
    %v1154 = vpack.c.b16 %v962, %v938
    %v1155 = vpack.c.b16 %v963, %v939
    %v1156 = vpack.c.b16 %v964, %v940
    %v1157 = vpack.c.b16 %v965, %v941
    %v1158 = vpack.c.b16 %v990, %v966
    %v1159 = vpack.c.b16 %v991, %v967
    %v1160 = vpack.c.b16 %v992, %v968
    %v1161 = vpack.c.b16 %v993, %v969
    %v1162 = vpack.c.b16 %v994, %v970
    %v1163 = vpack.c.b16 %v995, %v971
    %v1164 = vpack.c.b16 %v996, %v972
    %v1165 = vpack.c.b16 %v997, %v973
    %v1166 = vpack.c.b16 %v998, %v974
    %v1167 = vpack.c.b16 %v999, %v975
    %v1168 = vpack.c.b16 %v1000, %v976
    %v1169 = vpack.c.b16 %v1001, %v977
    %v1170 = vpack.c.b16 %v1002, %v978
    %v1171 = vpack.c.b16 %v1003, %v979
    %v1172 = vpack.c.b16 %v1004, %v980
    %v1173 = vpack.c.b16 %v1005, %v981
    %v1174 = vpack.c.b16 %v1006, %v982
    %v1175 = vpack.c.b16 %v1007, %v983
    %v1176 = vpack.c.b16 %v1008, %v984
    %v1177 = vpack.c.b16 %v1009, %v985
    %v1178 = vpack.c.b16 %v1010, %v986
    %v1179 = vpack.c.b16 %v1011, %v987
    %v1180 = vpack.c.b16 %v1012, %v988
    %v1181 = vpack.c.b16 %v1013, %v989
    %v1182 = vpack.c.b16 %v1014, %v1014
    %v1183 = vpack.c.b16 %v1015, %v1015
    %v1184 = vpack.c.b16 %v1016, %v1016
    %v1185 = vpack.c.b16 %v1017, %v1017
    %v1186 = vpack.c.b16 %v1018, %v1018
    %v1187 = vpack.c.b16 %v1019, %v1019
    %v1188 = vpack.c.b16 %v1020, %v1020
    %v1189 = vpack.c.b16 %v1021, %v1021
    %v1190 = vpack.c.b16 %v1022, %v1022
    %v1191 = vpack.c.b16 %v1023, %v1023
    %v1192 = vpack.c.b16 %v1024, %v1024
    %v1193 = vpack.c.b16 %v1025, %v1025
    %v1194 = vpack.c.b16 %v1026, %v1026
    %v1195 = vpack.c.b16 %v1027, %v1027
    %v1196 = vpack.c.b16 %v1028, %v1028
    %v1197 = vpack.c.b16 %v1029, %v1029
    %v1198 = vpack.c.b16 %v1030, %v1030
    %v1199 = vpack.c.b16 %v1031, %v1031
    %v1200 = vpack.c.b16 %v1032, %v1032
    %v1201 = vpack.c.b16 %v1033, %v1033
    %v1202 = vpack.c.b16 %v1034, %v1034
    %v1203 = vpack.c.b16 %v1035, %v1035
    %v1204 = vpack.c.b16 %v1036, %v1036
    %v1205 = vpack.c.b16 %v1037, %v1037
    %v1353 = vlaneseq
    %v1354 = vshrl.u32 %v1353, 7
    %v1355 = vsub.s32 0, %v1354
    %v1356 = vrot.slane %v567, %v1355
    %v1357 = vlaneseq
    %v1358 = vshrl.u32 %v1357, 7
    %v1359 = vsub.s32 1, %v1358
    %v1360 = vrot.slane %v567, %v1359
    %v1361 = vlaneseq
    %v1362 = vshrl.u32 %v1361, 7
    %v1363 = vsub.s32 2, %v1362
    %v1364 = vrot.slane %v567, %v1363
    %v1365 = vlaneseq
    %v1366 = vshrl.u32 %v1365, 7
    %v1367 = vsub.s32 3, %v1366
    %v1368 = vrot.slane %v567, %v1367
    %v1369 = vlaneseq
    %v1370 = vshrl.u32 %v1369, 7
    %v1371 = vsub.s32 4, %v1370
    %v1372 = vrot.slane %v567, %v1371
    %v1373 = vlaneseq
    %v1374 = vshrl.u32 %v1373, 7
    %v1375 = vsub.s32 5, %v1374
    %v1376 = vrot.slane %v567, %v1375
    %v1377 = vlaneseq
    %v1378 = vshrl.u32 %v1377, 7
    %v1379 = vsub.s32 6, %v1378
    %v1380 = vrot.slane %v567, %v1379
    %v1381 = vlaneseq
    %v1382 = vshrl.u32 %v1381, 7
    %v1383 = vsub.s32 7, %v1382
    %v1384 = vrot.slane %v567, %v1383
    %v1385 = vlaneseq
    %v1386 = vshrl.u32 %v1385, 7
    %v1387 = vsub.s32 0, %v1386
    %v1388 = vrot.slane %v568, %v1387
    %v1389 = vlaneseq
    %v1390 = vshrl.u32 %v1389, 7
    %v1391 = vsub.s32 1, %v1390
    %v1392 = vrot.slane %v568, %v1391
    %v1393 = vlaneseq
    %v1394 = vshrl.u32 %v1393, 7
    %v1395 = vsub.s32 2, %v1394
    %v1396 = vrot.slane %v568, %v1395
    %v1397 = vlaneseq
    %v1398 = vshrl.u32 %v1397, 7
    %v1399 = vsub.s32 3, %v1398
    %v1400 = vrot.slane %v568, %v1399
    %v1401 = vlaneseq
    %v1402 = vshrl.u32 %v1401, 7
    %v1403 = vsub.s32 4, %v1402
    %v1404 = vrot.slane %v568, %v1403
    %v1405 = vlaneseq
    %v1406 = vshrl.u32 %v1405, 7
    %v1407 = vsub.s32 5, %v1406
    %v1408 = vrot.slane %v568, %v1407
    %v1409 = vlaneseq
    %v1410 = vshrl.u32 %v1409, 7
    %v1411 = vsub.s32 6, %v1410
    %v1412 = vrot.slane %v568, %v1411
    %v1413 = vlaneseq
    %v1414 = vshrl.u32 %v1413, 7
    %v1415 = vsub.s32 7, %v1414
    %v1416 = vrot.slane %v568, %v1415
    %v1417 = vlaneseq
    %v1418 = vshrl.u32 %v1417, 7
    %v1419 = vsub.s32 0, %v1418
    %v1420 = vrot.slane %v569, %v1419
    %v1421 = vlaneseq
    %v1422 = vshrl.u32 %v1421, 7
    %v1423 = vsub.s32 1, %v1422
    %v1424 = vrot.slane %v569, %v1423
    %v1425 = vlaneseq
    %v1426 = vshrl.u32 %v1425, 7
    %v1427 = vsub.s32 2, %v1426
    %v1428 = vrot.slane %v569, %v1427
    %v1429 = vlaneseq
    %v1430 = vshrl.u32 %v1429, 7
    %v1431 = vsub.s32 3, %v1430
    %v1432 = vrot.slane %v569, %v1431
    %v1433 = vlaneseq
    %v1434 = vshrl.u32 %v1433, 7
    %v1435 = vsub.s32 4, %v1434
    %v1436 = vrot.slane %v569, %v1435
    %v1437 = vlaneseq
    %v1438 = vshrl.u32 %v1437, 7
    %v1439 = vsub.s32 5, %v1438
    %v1440 = vrot.slane %v569, %v1439
    %v1441 = vlaneseq
    %v1442 = vshrl.u32 %v1441, 7
    %v1443 = vsub.s32 6, %v1442
    %v1444 = vrot.slane %v569, %v1443
    %v1445 = vlaneseq
    %v1446 = vshrl.u32 %v1445, 7
    %v1447 = vsub.s32 7, %v1446
    %v1448 = vrot.slane %v569, %v1447
    %v1474 = vsel %vm397, %v410, 0
    %vm1476 = vcmask 1041408
    %v1478 = vsel %vm1476, %v1182, 0
    %v1481 = vsel %vm1476, %v1183, 0
    %v1484 = vsel %vm1476, %v1184, 0
    %v1487 = vsel %vm1476, %v1185, 0
    %v1490 = vsel %vm1476, %v1186, 0
    %v1493 = vsel %vm1476, %v1187, 0
    %v1496 = vsel %vm1476, %v1188, 0
    %v1499 = vsel %vm1476, %v1189, 0
    %v1502 = vsel %vm1476, %v1190, 0
    %v1505 = vsel %vm1476, %v1191, 0
    %v1508 = vsel %vm1476, %v1192, 0
    %v1511 = vsel %vm1476, %v1193, 0
    %v1514 = vsel %vm1476, %v1194, 0
    %v1517 = vsel %vm1476, %v1195, 0
    %v1520 = vsel %vm1476, %v1196, 0
    %v1523 = vsel %vm1476, %v1197, 0
    %v1526 = vsel %vm1476, %v1198, 0
    %v1529 = vsel %vm1476, %v1199, 0
    %v1532 = vsel %vm1476, %v1200, 0
    %v1535 = vsel %vm1476, %v1201, 0
    %v1538 = vsel %vm1476, %v1202, 0
    %v1541 = vsel %vm1476, %v1203, 0
    %v1544 = vsel %vm1476, %v1204, 0
    %v1547 = vsel %vm1476, %v1205, 0
    %1549 = vmatprep.subr.bf16.mxu0 0
    %1550 = vmatpush1.bf16.msra.mxu0 0
    %1551 = vmatprep.subr.bf16.mxu0 %v1481
    %1552 = vmatpush1.bf16.msra.mxu0 %v1478
    %1553 = vmatprep.subr.bf16.mxu0 %v1159
    %1554 = vmatpush1.bf16.msra.mxu0 %v1158
    %1555 = vmatprep.subr.bf16.mxu0 %v1135
    %1556 = vmatpush1.bf16.msra.mxu0 %v1134
    %1557 = vmatprep.subr.bf16.mxu0 %v1111
    %1558 = vmatpush1.bf16.msra.mxu0 %v1110
    %1559 = vmatprep.subr.bf16.mxu0 %v1087
    %1560 = vmatpush1.bf16.msra.mxu0 %v1086
    %1561 = vmatprep.subr.bf16.mxu0 %v1063
    %1562 = vmatpush1.bf16.msra.mxu0 %v1062
    %1563 = vmatprep.subr.bf16.mxu0 %v1039
    %1564 = vmatpush1.bf16.msra.mxu0 %v1038
    %1565 = vmatprep.subr.bf16.mxu0 0
    %1566 = vmatpush2.bf16.msra.mxu0 0
    %1567 = vmatprep.subr.bf16.mxu0 0
    %1568 = vmatpush2.bf16.msra.mxu0 0
    %1569 = vmatprep.subr.bf16.mxu0 0
    %1570 = vmatpush2.bf16.msra.mxu0 0
    %1571 = vmatprep.subr.bf16.mxu0 0
    %1572 = vmatpush2.bf16.msra.mxu0 0
    %1573 = vmatprep.subr.bf16.mxu0 0
    %1574 = vmatpush2.bf16.msra.mxu0 0
    %1575 = vmatprep.subr.bf16.mxu0 0
    %1576 = vmatpush2.bf16.msra.mxu0 0
    %1577 = vmatprep.subr.bf16.mxu0 0
    %1578 = vmatpush2.bf16.msra.mxu0 0
    %1579 = vmatprep.subr.bf16.mxu0 0
    %1580 = vmatpush2.bf16.msra.mxu0 0
    %1581 = vmatprep.mubr.bf16.mxu0 0
    %1582 = vmatmul.mubr.bf16.gmra.mxu0 %v1474
    %v1583 = vpop.f32.mrf.mxu0
    %v1584 = vadd.f32 %v1356, %v1583
    %v1585 = vpop.f32.mrf.mxu0
    %v1586 = vadd.f32 %v1360, %v1585
    %v1587 = vpop.f32.mrf.mxu0
    %v1588 = vpop.f32.mrf.mxu0
    %1589 = vdwg.mxu0
    %1590 = vmatprep.subr.bf16.mxu0 0
    %1591 = vmatpush1.bf16.msra.mxu0 0
    %1592 = vmatprep.subr.bf16.mxu0 %v1487
    %1593 = vmatpush1.bf16.msra.mxu0 %v1484
    %1594 = vmatprep.subr.bf16.mxu0 %v1161
    %1595 = vmatpush1.bf16.msra.mxu0 %v1160
    %1596 = vmatprep.subr.bf16.mxu0 %v1137
    %1597 = vmatpush1.bf16.msra.mxu0 %v1136
    %1598 = vmatprep.subr.bf16.mxu0 %v1113
    %1599 = vmatpush1.bf16.msra.mxu0 %v1112
    %1600 = vmatprep.subr.bf16.mxu0 %v1089
    %1601 = vmatpush1.bf16.msra.mxu0 %v1088
    %1602 = vmatprep.subr.bf16.mxu0 %v1065
    %1603 = vmatpush1.bf16.msra.mxu0 %v1064
    %1604 = vmatprep.subr.bf16.mxu0 %v1041
    %1605 = vmatpush1.bf16.msra.mxu0 %v1040
    %1606 = vmatprep.subr.bf16.mxu0 0
    %1607 = vmatpush2.bf16.msra.mxu0 0
    %1608 = vmatprep.subr.bf16.mxu0 0
    %1609 = vmatpush2.bf16.msra.mxu0 0
    %1610 = vmatprep.subr.bf16.mxu0 0
    %1611 = vmatpush2.bf16.msra.mxu0 0
    %1612 = vmatprep.subr.bf16.mxu0 0
    %1613 = vmatpush2.bf16.msra.mxu0 0
    %1614 = vmatprep.subr.bf16.mxu0 0
    %1615 = vmatpush2.bf16.msra.mxu0 0
    %1616 = vmatprep.subr.bf16.mxu0 0
    %1617 = vmatpush2.bf16.msra.mxu0 0
    %1618 = vmatprep.subr.bf16.mxu0 0
    %1619 = vmatpush2.bf16.msra.mxu0 0
    %1620 = vmatprep.subr.bf16.mxu0 0
    %1621 = vmatpush2.bf16.msra.mxu0 0
    %1622 = vmatprep.mubr.bf16.mxu0 0
    %1623 = vmatmul.mubr.bf16.gmra.mxu0 %v1474
    %v1624 = vpop.f32.mrf.mxu0
    %v1625 = vadd.f32 %v1364, %v1624
    %v1626 = vpop.f32.mrf.mxu0
    %v1627 = vadd.f32 %v1368, %v1626
    %v1628 = vpop.f32.mrf.mxu0
    %v1629 = vpop.f32.mrf.mxu0
    %1630 = vdwg.mxu0
    %1631 = vmatprep.subr.bf16.mxu0 0
    %1632 = vmatpush1.bf16.msra.mxu0 0
    %1633 = vmatprep.subr.bf16.mxu0 %v1493
    %1634 = vmatpush1.bf16.msra.mxu0 %v1490
    %1635 = vmatprep.subr.bf16.mxu0 %v1163
    %1636 = vmatpush1.bf16.msra.mxu0 %v1162
    %1637 = vmatprep.subr.bf16.mxu0 %v1139
    %1638 = vmatpush1.bf16.msra.mxu0 %v1138
    %1639 = vmatprep.subr.bf16.mxu0 %v1115
    %1640 = vmatpush1.bf16.msra.mxu0 %v1114
    %1641 = vmatprep.subr.bf16.mxu0 %v1091
    %1642 = vmatpush1.bf16.msra.mxu0 %v1090
    %1643 = vmatprep.subr.bf16.mxu0 %v1067
    %1644 = vmatpush1.bf16.msra.mxu0 %v1066
    %1645 = vmatprep.subr.bf16.mxu0 %v1043
    %1646 = vmatpush1.bf16.msra.mxu0 %v1042
    %1647 = vmatprep.subr.bf16.mxu0 0
    %1648 = vmatpush2.bf16.msra.mxu0 0
    %1649 = vmatprep.subr.bf16.mxu0 0
    %1650 = vmatpush2.bf16.msra.mxu0 0
    %1651 = vmatprep.subr.bf16.mxu0 0
    %1652 = vmatpush2.bf16.msra.mxu0 0
    %1653 = vmatprep.subr.bf16.mxu0 0
    %1654 = vmatpush2.bf16.msra.mxu0 0
    %1655 = vmatprep.subr.bf16.mxu0 0
    %1656 = vmatpush2.bf16.msra.mxu0 0
    %1657 = vmatprep.subr.bf16.mxu0 0
    %1658 = vmatpush2.bf16.msra.mxu0 0
    %1659 = vmatprep.subr.bf16.mxu0 0
    %1660 = vmatpush2.bf16.msra.mxu0 0
    %1661 = vmatprep.subr.bf16.mxu0 0
    %1662 = vmatpush2.bf16.msra.mxu0 0
    %1663 = vmatprep.mubr.bf16.mxu0 0
    %1664 = vmatmul.mubr.bf16.gmra.mxu0 %v1474
    %v1665 = vpop.f32.mrf.mxu0
    %v1666 = vadd.f32 %v1372, %v1665
    %v1667 = vpop.f32.mrf.mxu0
    %v1668 = vadd.f32 %v1376, %v1667
    %v1669 = vpop.f32.mrf.mxu0
    %v1670 = vpop.f32.mrf.mxu0
    %1671 = vdwg.mxu0
    %1672 = vmatprep.subr.bf16.mxu0 0
    %1673 = vmatpush1.bf16.msra.mxu0 0
    %1674 = vmatprep.subr.bf16.mxu0 %v1499
    %1675 = vmatpush1.bf16.msra.mxu0 %v1496
    %1676 = vmatprep.subr.bf16.mxu0 %v1165
    %1677 = vmatpush1.bf16.msra.mxu0 %v1164
    %1678 = vmatprep.subr.bf16.mxu0 %v1141
    %1679 = vmatpush1.bf16.msra.mxu0 %v1140
    %1680 = vmatprep.subr.bf16.mxu0 %v1117
    %1681 = vmatpush1.bf16.msra.mxu0 %v1116
    %1682 = vmatprep.subr.bf16.mxu0 %v1093
    %1683 = vmatpush1.bf16.msra.mxu0 %v1092
    %1684 = vmatprep.subr.bf16.mxu0 %v1069
    %1685 = vmatpush1.bf16.msra.mxu0 %v1068
    %1686 = vmatprep.subr.bf16.mxu0 %v1045
    %1687 = vmatpush1.bf16.msra.mxu0 %v1044
    %1688 = vmatprep.subr.bf16.mxu0 0
    %1689 = vmatpush2.bf16.msra.mxu0 0
    %1690 = vmatprep.subr.bf16.mxu0 0
    %1691 = vmatpush2.bf16.msra.mxu0 0
    %1692 = vmatprep.subr.bf16.mxu0 0
    %1693 = vmatpush2.bf16.msra.mxu0 0
    %1694 = vmatprep.subr.bf16.mxu0 0
    %1695 = vmatpush2.bf16.msra.mxu0 0
    %1696 = vmatprep.subr.bf16.mxu0 0
    %1697 = vmatpush2.bf16.msra.mxu0 0
    %1698 = vmatprep.subr.bf16.mxu0 0
    %1699 = vmatpush2.bf16.msra.mxu0 0
    %1700 = vmatprep.subr.bf16.mxu0 0
    %1701 = vmatpush2.bf16.msra.mxu0 0
    %1702 = vmatprep.subr.bf16.mxu0 0
    %1703 = vmatpush2.bf16.msra.mxu0 0
    %1704 = vmatprep.mubr.bf16.mxu0 0
    %1705 = vmatmul.mubr.bf16.gmra.mxu0 %v1474
    %v1706 = vpop.f32.mrf.mxu0
    %v1707 = vadd.f32 %v1380, %v1706
    %v1708 = vpop.f32.mrf.mxu0
    %v1709 = vadd.f32 %v1384, %v1708
    %v1710 = vpop.f32.mrf.mxu0
    %v1711 = vpop.f32.mrf.mxu0
    %1712 = vdwg.mxu0
    %1713 = vmatprep.subr.bf16.mxu0 0
    %1714 = vmatpush1.bf16.msra.mxu0 0
    %1715 = vmatprep.subr.bf16.mxu0 %v1505
    %1716 = vmatpush1.bf16.msra.mxu0 %v1502
    %1717 = vmatprep.subr.bf16.mxu0 %v1167
    %1718 = vmatpush1.bf16.msra.mxu0 %v1166
    %1719 = vmatprep.subr.bf16.mxu0 %v1143
    %1720 = vmatpush1.bf16.msra.mxu0 %v1142
    %1721 = vmatprep.subr.bf16.mxu0 %v1119
    %1722 = vmatpush1.bf16.msra.mxu0 %v1118
    %1723 = vmatprep.subr.bf16.mxu0 %v1095
    %1724 = vmatpush1.bf16.msra.mxu0 %v1094
    %1725 = vmatprep.subr.bf16.mxu0 %v1071
    %1726 = vmatpush1.bf16.msra.mxu0 %v1070
    %1727 = vmatprep.subr.bf16.mxu0 %v1047
    %1728 = vmatpush1.bf16.msra.mxu0 %v1046
    %1729 = vmatprep.subr.bf16.mxu0 0
    %1730 = vmatpush2.bf16.msra.mxu0 0
    %1731 = vmatprep.subr.bf16.mxu0 0
    %1732 = vmatpush2.bf16.msra.mxu0 0
    %1733 = vmatprep.subr.bf16.mxu0 0
    %1734 = vmatpush2.bf16.msra.mxu0 0
    %1735 = vmatprep.subr.bf16.mxu0 0
    %1736 = vmatpush2.bf16.msra.mxu0 0
    %1737 = vmatprep.subr.bf16.mxu0 0
    %1738 = vmatpush2.bf16.msra.mxu0 0
    %1739 = vmatprep.subr.bf16.mxu0 0
    %1740 = vmatpush2.bf16.msra.mxu0 0
    %1741 = vmatprep.subr.bf16.mxu0 0
    %1742 = vmatpush2.bf16.msra.mxu0 0
    %1743 = vmatprep.subr.bf16.mxu0 0
    %1744 = vmatpush2.bf16.msra.mxu0 0
    %1745 = vmatprep.mubr.bf16.mxu0 0
    %1746 = vmatmul.mubr.bf16.gmra.mxu0 %v1474
    %v1747 = vpop.f32.mrf.mxu0
    %v1748 = vadd.f32 %v1388, %v1747
    %v1749 = vpop.f32.mrf.mxu0
    %v1750 = vadd.f32 %v1392, %v1749
    %v1751 = vpop.f32.mrf.mxu0
    %v1752 = vpop.f32.mrf.mxu0
    %1753 = vdwg.mxu0
    %1754 = vmatprep.subr.bf16.mxu0 0
    %1755 = vmatpush1.bf16.msra.mxu0 0
    %1756 = vmatprep.subr.bf16.mxu0 %v1511
    %1757 = vmatpush1.bf16.msra.mxu0 %v1508
    %1758 = vmatprep.subr.bf16.mxu0 %v1169
    %1759 = vmatpush1.bf16.msra.mxu0 %v1168
    %1760 = vmatprep.subr.bf16.mxu0 %v1145
    %1761 = vmatpush1.bf16.msra.mxu0 %v1144
    %1762 = vmatprep.subr.bf16.mxu0 %v1121
    %1763 = vmatpush1.bf16.msra.mxu0 %v1120
    %1764 = vmatprep.subr.bf16.mxu0 %v1097
    %1765 = vmatpush1.bf16.msra.mxu0 %v1096
    %1766 = vmatprep.subr.bf16.mxu0 %v1073
    %1767 = vmatpush1.bf16.msra.mxu0 %v1072
    %1768 = vmatprep.subr.bf16.mxu0 %v1049
    %1769 = vmatpush1.bf16.msra.mxu0 %v1048
    %1770 = vmatprep.subr.bf16.mxu0 0
    %1771 = vmatpush2.bf16.msra.mxu0 0
    %1772 = vmatprep.subr.bf16.mxu0 0
    %1773 = vmatpush2.bf16.msra.mxu0 0
    %1774 = vmatprep.subr.bf16.mxu0 0
    %1775 = vmatpush2.bf16.msra.mxu0 0
    %1776 = vmatprep.subr.bf16.mxu0 0
    %1777 = vmatpush2.bf16.msra.mxu0 0
    %1778 = vmatprep.subr.bf16.mxu0 0
    %1779 = vmatpush2.bf16.msra.mxu0 0
    %1780 = vmatprep.subr.bf16.mxu0 0
    %1781 = vmatpush2.bf16.msra.mxu0 0
    %1782 = vmatprep.subr.bf16.mxu0 0
    %1783 = vmatpush2.bf16.msra.mxu0 0
    %1784 = vmatprep.subr.bf16.mxu0 0
    %1785 = vmatpush2.bf16.msra.mxu0 0
    %1786 = vmatprep.mubr.bf16.mxu0 0
    %1787 = vmatmul.mubr.bf16.gmra.mxu0 %v1474
    %v1788 = vpop.f32.mrf.mxu0
    %v1789 = vadd.f32 %v1396, %v1788
    %v1790 = vpop.f32.mrf.mxu0
    %v1791 = vadd.f32 %v1400, %v1790
    %v1792 = vpop.f32.mrf.mxu0
    %v1793 = vpop.f32.mrf.mxu0
    %1794 = vdwg.mxu0
    %1795 = vmatprep.subr.bf16.mxu0 0
    %1796 = vmatpush1.bf16.msra.mxu0 0
    %1797 = vmatprep.subr.bf16.mxu0 %v1517
    %1798 = vmatpush1.bf16.msra.mxu0 %v1514
    %1799 = vmatprep.subr.bf16.mxu0 %v1171
    %1800 = vmatpush1.bf16.msra.mxu0 %v1170
    %1801 = vmatprep.subr.bf16.mxu0 %v1147
    %1802 = vmatpush1.bf16.msra.mxu0 %v1146
    %1803 = vmatprep.subr.bf16.mxu0 %v1123
    %1804 = vmatpush1.bf16.msra.mxu0 %v1122
    %1805 = vmatprep.subr.bf16.mxu0 %v1099
    %1806 = vmatpush1.bf16.msra.mxu0 %v1098
    %1807 = vmatprep.subr.bf16.mxu0 %v1075
    %1808 = vmatpush1.bf16.msra.mxu0 %v1074
    %1809 = vmatprep.subr.bf16.mxu0 %v1051
    %1810 = vmatpush1.bf16.msra.mxu0 %v1050
    %1811 = vmatprep.subr.bf16.mxu0 0
    %1812 = vmatpush2.bf16.msra.mxu0 0
    %1813 = vmatprep.subr.bf16.mxu0 0
    %1814 = vmatpush2.bf16.msra.mxu0 0
    %1815 = vmatprep.subr.bf16.mxu0 0
    %1816 = vmatpush2.bf16.msra.mxu0 0
    %1817 = vmatprep.subr.bf16.mxu0 0
    %1818 = vmatpush2.bf16.msra.mxu0 0
    %1819 = vmatprep.subr.bf16.mxu0 0
    %1820 = vmatpush2.bf16.msra.mxu0 0
    %1821 = vmatprep.subr.bf16.mxu0 0
    %1822 = vmatpush2.bf16.msra.mxu0 0
    %1823 = vmatprep.subr.bf16.mxu0 0
    %1824 = vmatpush2.bf16.msra.mxu0 0
    %1825 = vmatprep.subr.bf16.mxu0 0
    %1826 = vmatpush2.bf16.msra.mxu0 0
    %1827 = vmatprep.mubr.bf16.mxu0 0
    %1828 = vmatmul.mubr.bf16.gmra.mxu0 %v1474
    %v1829 = vpop.f32.mrf.mxu0
    %v1830 = vadd.f32 %v1404, %v1829
    %v1831 = vpop.f32.mrf.mxu0
    %v1832 = vadd.f32 %v1408, %v1831
    %v1833 = vpop.f32.mrf.mxu0
    %v1834 = vpop.f32.mrf.mxu0
    %1835 = vdwg.mxu0
    %1836 = vmatprep.subr.bf16.mxu0 0
    %1837 = vmatpush1.bf16.msra.mxu0 0
    %1838 = vmatprep.subr.bf16.mxu0 %v1523
    %1839 = vmatpush1.bf16.msra.mxu0 %v1520
    %1840 = vmatprep.subr.bf16.mxu0 %v1173
    %1841 = vmatpush1.bf16.msra.mxu0 %v1172
    %1842 = vmatprep.subr.bf16.mxu0 %v1149
    %1843 = vmatpush1.bf16.msra.mxu0 %v1148
    %1844 = vmatprep.subr.bf16.mxu0 %v1125
    %1845 = vmatpush1.bf16.msra.mxu0 %v1124
    %1846 = vmatprep.subr.bf16.mxu0 %v1101
    %1847 = vmatpush1.bf16.msra.mxu0 %v1100
    %1848 = vmatprep.subr.bf16.mxu0 %v1077
    %1849 = vmatpush1.bf16.msra.mxu0 %v1076
    %1850 = vmatprep.subr.bf16.mxu0 %v1053
    %1851 = vmatpush1.bf16.msra.mxu0 %v1052
    %1852 = vmatprep.subr.bf16.mxu0 0
    %1853 = vmatpush2.bf16.msra.mxu0 0
    %1854 = vmatprep.subr.bf16.mxu0 0
    %1855 = vmatpush2.bf16.msra.mxu0 0
    %1856 = vmatprep.subr.bf16.mxu0 0
    %1857 = vmatpush2.bf16.msra.mxu0 0
    %1858 = vmatprep.subr.bf16.mxu0 0
    %1859 = vmatpush2.bf16.msra.mxu0 0
    %1860 = vmatprep.subr.bf16.mxu0 0
    %1861 = vmatpush2.bf16.msra.mxu0 0
    %1862 = vmatprep.subr.bf16.mxu0 0
    %1863 = vmatpush2.bf16.msra.mxu0 0
    %1864 = vmatprep.subr.bf16.mxu0 0
    %1865 = vmatpush2.bf16.msra.mxu0 0
    %1866 = vmatprep.subr.bf16.mxu0 0
    %1867 = vmatpush2.bf16.msra.mxu0 0
    %1868 = vmatprep.mubr.bf16.mxu0 0
    %1869 = vmatmul.mubr.bf16.gmra.mxu0 %v1474
    %v1870 = vpop.f32.mrf.mxu0
    %v1871 = vadd.f32 %v1412, %v1870
    %v1872 = vpop.f32.mrf.mxu0
    %v1873 = vadd.f32 %v1416, %v1872
    %v1874 = vpop.f32.mrf.mxu0
    %v1875 = vpop.f32.mrf.mxu0
    %1876 = vdwg.mxu0
    %1877 = vmatprep.subr.bf16.mxu0 0
    %1878 = vmatpush1.bf16.msra.mxu0 0
    %1879 = vmatprep.subr.bf16.mxu0 %v1529
    %1880 = vmatpush1.bf16.msra.mxu0 %v1526
    %1881 = vmatprep.subr.bf16.mxu0 %v1175
    %1882 = vmatpush1.bf16.msra.mxu0 %v1174
    %1883 = vmatprep.subr.bf16.mxu0 %v1151
    %1884 = vmatpush1.bf16.msra.mxu0 %v1150
    %1885 = vmatprep.subr.bf16.mxu0 %v1127
    %1886 = vmatpush1.bf16.msra.mxu0 %v1126
    %1887 = vmatprep.subr.bf16.mxu0 %v1103
    %1888 = vmatpush1.bf16.msra.mxu0 %v1102
    %1889 = vmatprep.subr.bf16.mxu0 %v1079
    %1890 = vmatpush1.bf16.msra.mxu0 %v1078
    %1891 = vmatprep.subr.bf16.mxu0 %v1055
    %1892 = vmatpush1.bf16.msra.mxu0 %v1054
    %1893 = vmatprep.subr.bf16.mxu0 0
    %1894 = vmatpush2.bf16.msra.mxu0 0
    %1895 = vmatprep.subr.bf16.mxu0 0
    %1896 = vmatpush2.bf16.msra.mxu0 0
    %1897 = vmatprep.subr.bf16.mxu0 0
    %1898 = vmatpush2.bf16.msra.mxu0 0
    %1899 = vmatprep.subr.bf16.mxu0 0
    %1900 = vmatpush2.bf16.msra.mxu0 0
    %1901 = vmatprep.subr.bf16.mxu0 0
    %1902 = vmatpush2.bf16.msra.mxu0 0
    %1903 = vmatprep.subr.bf16.mxu0 0
    %1904 = vmatpush2.bf16.msra.mxu0 0
    %1905 = vmatprep.subr.bf16.mxu0 0
    %1906 = vmatpush2.bf16.msra.mxu0 0
    %1907 = vmatprep.subr.bf16.mxu0 0
    %1908 = vmatpush2.bf16.msra.mxu0 0
    %1909 = vmatprep.mubr.bf16.mxu0 0
    %1910 = vmatmul.mubr.bf16.gmra.mxu0 %v1474
    %v1911 = vpop.f32.mrf.mxu0
    %v1912 = vadd.f32 %v1420, %v1911
    %v1913 = vpop.f32.mrf.mxu0
    %v1914 = vadd.f32 %v1424, %v1913
    %v1915 = vpop.f32.mrf.mxu0
    %v1916 = vpop.f32.mrf.mxu0
    %1917 = vdwg.mxu0
    %1918 = vmatprep.subr.bf16.mxu0 0
    %1919 = vmatpush1.bf16.msra.mxu0 0
    %1920 = vmatprep.subr.bf16.mxu0 %v1535
    %1921 = vmatpush1.bf16.msra.mxu0 %v1532
    %1922 = vmatprep.subr.bf16.mxu0 %v1177
    %1923 = vmatpush1.bf16.msra.mxu0 %v1176
    %1924 = vmatprep.subr.bf16.mxu0 %v1153
    %1925 = vmatpush1.bf16.msra.mxu0 %v1152
    %1926 = vmatprep.subr.bf16.mxu0 %v1129
    %1927 = vmatpush1.bf16.msra.mxu0 %v1128
    %1928 = vmatprep.subr.bf16.mxu0 %v1105
    %1929 = vmatpush1.bf16.msra.mxu0 %v1104
    %1930 = vmatprep.subr.bf16.mxu0 %v1081
    %1931 = vmatpush1.bf16.msra.mxu0 %v1080
    %1932 = vmatprep.subr.bf16.mxu0 %v1057
    %1933 = vmatpush1.bf16.msra.mxu0 %v1056
    %1934 = vmatprep.subr.bf16.mxu0 0
    %1935 = vmatpush2.bf16.msra.mxu0 0
    %1936 = vmatprep.subr.bf16.mxu0 0
    %1937 = vmatpush2.bf16.msra.mxu0 0
    %1938 = vmatprep.subr.bf16.mxu0 0
    %1939 = vmatpush2.bf16.msra.mxu0 0
    %1940 = vmatprep.subr.bf16.mxu0 0
    %1941 = vmatpush2.bf16.msra.mxu0 0
    %1942 = vmatprep.subr.bf16.mxu0 0
    %1943 = vmatpush2.bf16.msra.mxu0 0
    %1944 = vmatprep.subr.bf16.mxu0 0
    %1945 = vmatpush2.bf16.msra.mxu0 0
    %1946 = vmatprep.subr.bf16.mxu0 0
    %1947 = vmatpush2.bf16.msra.mxu0 0
    %1948 = vmatprep.subr.bf16.mxu0 0
    %1949 = vmatpush2.bf16.msra.mxu0 0
    %1950 = vmatprep.mubr.bf16.mxu0 0
    %1951 = vmatmul.mubr.bf16.gmra.mxu0 %v1474
    %v1952 = vpop.f32.mrf.mxu0
    %v1953 = vadd.f32 %v1428, %v1952
    %v1954 = vpop.f32.mrf.mxu0
    %v1955 = vadd.f32 %v1432, %v1954
    %v1956 = vpop.f32.mrf.mxu0
    %v1957 = vpop.f32.mrf.mxu0
    %1958 = vdwg.mxu0
    %1959 = vmatprep.subr.bf16.mxu0 0
    %1960 = vmatpush1.bf16.msra.mxu0 0
    %1961 = vmatprep.subr.bf16.mxu0 %v1541
    %1962 = vmatpush1.bf16.msra.mxu0 %v1538
    %1963 = vmatprep.subr.bf16.mxu0 %v1179
    %1964 = vmatpush1.bf16.msra.mxu0 %v1178
    %1965 = vmatprep.subr.bf16.mxu0 %v1155
    %1966 = vmatpush1.bf16.msra.mxu0 %v1154
    %1967 = vmatprep.subr.bf16.mxu0 %v1131
    %1968 = vmatpush1.bf16.msra.mxu0 %v1130
    %1969 = vmatprep.subr.bf16.mxu0 %v1107
    %1970 = vmatpush1.bf16.msra.mxu0 %v1106
    %1971 = vmatprep.subr.bf16.mxu0 %v1083
    %1972 = vmatpush1.bf16.msra.mxu0 %v1082
    %1973 = vmatprep.subr.bf16.mxu0 %v1059
    %1974 = vmatpush1.bf16.msra.mxu0 %v1058
    %1975 = vmatprep.subr.bf16.mxu0 0
    %1976 = vmatpush2.bf16.msra.mxu0 0
    %1977 = vmatprep.subr.bf16.mxu0 0
    %1978 = vmatpush2.bf16.msra.mxu0 0
    %1979 = vmatprep.subr.bf16.mxu0 0
    %1980 = vmatpush2.bf16.msra.mxu0 0
    %1981 = vmatprep.subr.bf16.mxu0 0
    %1982 = vmatpush2.bf16.msra.mxu0 0
    %1983 = vmatprep.subr.bf16.mxu0 0
    %1984 = vmatpush2.bf16.msra.mxu0 0
    %1985 = vmatprep.subr.bf16.mxu0 0
    %1986 = vmatpush2.bf16.msra.mxu0 0
    %1987 = vmatprep.subr.bf16.mxu0 0
    %1988 = vmatpush2.bf16.msra.mxu0 0
    %1989 = vmatprep.subr.bf16.mxu0 0
    %1990 = vmatpush2.bf16.msra.mxu0 0
    %1991 = vmatprep.mubr.bf16.mxu0 0
    %1992 = vmatmul.mubr.bf16.gmra.mxu0 %v1474
    %v1993 = vpop.f32.mrf.mxu0
    %v1994 = vadd.f32 %v1436, %v1993
    %v1995 = vpop.f32.mrf.mxu0
    %v1996 = vadd.f32 %v1440, %v1995
    %v1997 = vpop.f32.mrf.mxu0
    %v1998 = vpop.f32.mrf.mxu0
    %1999 = vdwg.mxu0
    %2000 = vmatprep.subr.bf16.mxu0 0
    %2001 = vmatpush1.bf16.msra.mxu0 0
    %2002 = vmatprep.subr.bf16.mxu0 %v1547
    %2003 = vmatpush1.bf16.msra.mxu0 %v1544
    %2004 = vmatprep.subr.bf16.mxu0 %v1181
    %2005 = vmatpush1.bf16.msra.mxu0 %v1180
    %2006 = vmatprep.subr.bf16.mxu0 %v1157
    %2007 = vmatpush1.bf16.msra.mxu0 %v1156
    %2008 = vmatprep.subr.bf16.mxu0 %v1133
    %2009 = vmatpush1.bf16.msra.mxu0 %v1132
    %2010 = vmatprep.subr.bf16.mxu0 %v1109
    %2011 = vmatpush1.bf16.msra.mxu0 %v1108
    %2012 = vmatprep.subr.bf16.mxu0 %v1085
    %2013 = vmatpush1.bf16.msra.mxu0 %v1084
    %2014 = vmatprep.subr.bf16.mxu0 %v1061
    %2015 = vmatpush1.bf16.msra.mxu0 %v1060
    %2016 = vmatprep.subr.bf16.mxu0 0
    %2017 = vmatpush2.bf16.msra.mxu0 0
    %2018 = vmatprep.subr.bf16.mxu0 0
    %2019 = vmatpush2.bf16.msra.mxu0 0
    %2020 = vmatprep.subr.bf16.mxu0 0
    %2021 = vmatpush2.bf16.msra.mxu0 0
    %2022 = vmatprep.subr.bf16.mxu0 0
    %2023 = vmatpush2.bf16.msra.mxu0 0
    %2024 = vmatprep.subr.bf16.mxu0 0
    %2025 = vmatpush2.bf16.msra.mxu0 0
    %2026 = vmatprep.subr.bf16.mxu0 0
    %2027 = vmatpush2.bf16.msra.mxu0 0
    %2028 = vmatprep.subr.bf16.mxu0 0
    %2029 = vmatpush2.bf16.msra.mxu0 0
    %2030 = vmatprep.subr.bf16.mxu0 0
    %2031 = vmatpush2.bf16.msra.mxu0 0
    %2032 = vmatprep.mubr.bf16.mxu0 0
    %2033 = vmatmul.mubr.bf16.gmra.mxu0 %v1474
    %v2034 = vpop.f32.mrf.mxu0
    %v2035 = vadd.f32 %v1444, %v2034
    %v2036 = vpop.f32.mrf.mxu0
    %v2037 = vadd.f32 %v1448, %v2036
    %v2038 = vpop.f32.mrf.mxu0
    %v2039 = vpop.f32.mrf.mxu0
    %2040 = vdwg.mxu0
    %v2065 = vcombine.low %v1584, %v1586
    %v2066 = vcombine.low %v1625, %v1627
    %v2067 = vcombine.low %v1666, %v1668
    %v2068 = vcombine.low %v1707, %v1709
    %v2070 = vunpack.c.l.s4 1966171168
    %v2071 = vunpack.c.0.s8 %v2070
    %v2072 = vlaneseq
    %v2073 = vshrl.u32 %v2072, 7
    %v2074 = vsub.s32 %v2071, %v2073
    %v2075 = vrot.slane %v2065, %v2074
    %v2077 = vunpack.c.l.s4 1966171168
    %v2078 = vunpack.c.0.s8 %v2077
    %v2079 = vlaneseq
    %v2080 = vshrl.u32 %v2079, 7
    %v2081 = vsub.s32 %v2078, %v2080
    %v2082 = vrot.slane %v2066, %v2081
    %v2084 = vunpack.c.l.s4 1966171168
    %v2085 = vunpack.c.0.s8 %v2084
    %v2086 = vlaneseq
    %v2087 = vshrl.u32 %v2086, 7
    %v2088 = vsub.s32 %v2085, %v2087
    %v2089 = vrot.slane %v2067, %v2088
    %v2091 = vunpack.c.l.s4 1966171168
    %v2092 = vunpack.c.0.s8 %v2091
    %v2093 = vlaneseq
    %v2094 = vshrl.u32 %v2093, 7
    %v2095 = vsub.s32 %v2092, %v2094
    %v2096 = vrot.slane %v2068, %v2095
    %v2097 = vcombine.low %v2075, %v2082
    %v2098 = vcombine.low %v2089, %v2096
    %v2100 = vunpack.c.l.s4 1966171168
    %v2101 = vunpack.c.0.s8 %v2100
    %v2102 = vlaneseq
    %v2103 = vshrl.u32 %v2102, 7
    %v2104 = vsub.s32 %v2101, %v2103
    %v2105 = vrot.slane %v2097, %v2104
    %v2107 = vunpack.c.l.s4 1966171168
    %v2108 = vunpack.c.0.s8 %v2107
    %v2109 = vlaneseq
    %v2110 = vshrl.u32 %v2109, 7
    %v2111 = vsub.s32 %v2108, %v2110
    %v2112 = vrot.slane %v2098, %v2111
    %v2113 = vcombine.low %v2105, %v2112
    %v2114 = vcombine.low %v1748, %v1750
    %v2115 = vcombine.low %v1789, %v1791
    %v2116 = vcombine.low %v1830, %v1832
    %v2117 = vcombine.low %v1871, %v1873
    %v2119 = vunpack.c.l.s4 1966171168
    %v2120 = vunpack.c.0.s8 %v2119
    %v2121 = vlaneseq
    %v2122 = vshrl.u32 %v2121, 7
    %v2123 = vsub.s32 %v2120, %v2122
    %v2124 = vrot.slane %v2114, %v2123
    %v2126 = vunpack.c.l.s4 1966171168
    %v2127 = vunpack.c.0.s8 %v2126
    %v2128 = vlaneseq
    %v2129 = vshrl.u32 %v2128, 7
    %v2130 = vsub.s32 %v2127, %v2129
    %v2131 = vrot.slane %v2115, %v2130
    %v2133 = vunpack.c.l.s4 1966171168
    %v2134 = vunpack.c.0.s8 %v2133
    %v2135 = vlaneseq
    %v2136 = vshrl.u32 %v2135, 7
    %v2137 = vsub.s32 %v2134, %v2136
    %v2138 = vrot.slane %v2116, %v2137
    %v2140 = vunpack.c.l.s4 1966171168
    %v2141 = vunpack.c.0.s8 %v2140
    %v2142 = vlaneseq
    %v2143 = vshrl.u32 %v2142, 7
    %v2144 = vsub.s32 %v2141, %v2143
    %v2145 = vrot.slane %v2117, %v2144
    %v2146 = vcombine.low %v2124, %v2131
    %v2147 = vcombine.low %v2138, %v2145
    %v2149 = vunpack.c.l.s4 1966171168
    %v2150 = vunpack.c.0.s8 %v2149
    %v2151 = vlaneseq
    %v2152 = vshrl.u32 %v2151, 7
    %v2153 = vsub.s32 %v2150, %v2152
    %v2154 = vrot.slane %v2146, %v2153
    %v2156 = vunpack.c.l.s4 1966171168
    %v2157 = vunpack.c.0.s8 %v2156
    %v2158 = vlaneseq
    %v2159 = vshrl.u32 %v2158, 7
    %v2160 = vsub.s32 %v2157, %v2159
    %v2161 = vrot.slane %v2147, %v2160
    %v2162 = vcombine.low %v2154, %v2161
    %v2163 = vcombine.low %v1912, %v1914
    %v2164 = vcombine.low %v1953, %v1955
    %v2165 = vcombine.low %v1994, %v1996
    %v2166 = vcombine.low %v2035, %v2037
    %v2168 = vunpack.c.l.s4 1966171168
    %v2169 = vunpack.c.0.s8 %v2168
    %v2170 = vlaneseq
    %v2171 = vshrl.u32 %v2170, 7
    %v2172 = vsub.s32 %v2169, %v2171
    %v2173 = vrot.slane %v2163, %v2172
    %v2175 = vunpack.c.l.s4 1966171168
    %v2176 = vunpack.c.0.s8 %v2175
    %v2177 = vlaneseq
    %v2178 = vshrl.u32 %v2177, 7
    %v2179 = vsub.s32 %v2176, %v2178
    %v2180 = vrot.slane %v2164, %v2179
    %v2182 = vunpack.c.l.s4 1966171168
    %v2183 = vunpack.c.0.s8 %v2182
    %v2184 = vlaneseq
    %v2185 = vshrl.u32 %v2184, 7
    %v2186 = vsub.s32 %v2183, %v2185
    %v2187 = vrot.slane %v2165, %v2186
    %v2189 = vunpack.c.l.s4 1966171168
    %v2190 = vunpack.c.0.s8 %v2189
    %v2191 = vlaneseq
    %v2192 = vshrl.u32 %v2191, 7
    %v2193 = vsub.s32 %v2190, %v2192
    %v2194 = vrot.slane %v2166, %v2193
    %v2195 = vcombine.low %v2173, %v2180
    %v2196 = vcombine.low %v2187, %v2194
    %v2198 = vunpack.c.l.s4 1966171168
    %v2199 = vunpack.c.0.s8 %v2198
    %v2200 = vlaneseq
    %v2201 = vshrl.u32 %v2200, 7
    %v2202 = vsub.s32 %v2199, %v2201
    %v2203 = vrot.slane %v2195, %v2202
    %v2205 = vunpack.c.l.s4 1966171168
    %v2206 = vunpack.c.0.s8 %v2205
    %v2207 = vlaneseq
    %v2208 = vshrl.u32 %v2207, 7
    %v2209 = vsub.s32 %v2206, %v2208
    %v2210 = vrot.slane %v2196, %v2209
    %v2211 = vcombine.low %v2203, %v2210
    %2215 = vst [vmem:[%s7] sm:$0xff] %v2113
    %2216 = vst [vmem:[%s7 + $0x8] sm:$0xff] %v2162
    %2217 = vst [vmem:[%s7 + $0x10] sm:$0xff] %v2211
    // Predicated region
    $region46: #{model_forward.1} parent=1 // pred_check
      _
    $region47: #{model_forward.1} parent=1 // pred_check_branch
      %2219 = sbr.rel (0) target = $region49
    $region48: #{model_forward.1} parent=1 // pred_region
      _
    $region49: #{model_forward.1} parent=1 // pred_fallthru
      _
    // Predicated region
    $region50: #{model_forward.1} parent=1 // pred_check
      _
    $region51: #{model_forward.1} parent=1 // pred_check_branch
      %2221 = sbr.rel (0) target = $region53
    $region52: #{model_forward.1} parent=1 // pred_region
      _
    $region53: #{model_forward.1} parent=1 // pred_fallthru
      _
    %2222 = vsyncpa [#allocation3], 1
    %2223 = vsyncpa [#allocation5], 1
    %2224 = vsyncpa [#allocation8], 1

</llo_original>
